<compile_context>
chip_gen: v5e
topology: v5e:2x2
jax: 0.10.0
libtpu: 0.0.40
codegen_flags: <defaults>
</compile_context>

<pallas_src>
import jax
import jax.numpy as jnp
from jax.experimental import pallas as pl
from jax.experimental.pallas import tpu as pltpu

# ----------------------------- geometry ------------------------------------
PATCH = 10
GRID_H, GRID_W = 18, 11            # 18 * 11 = 198 tokens
N_TOK = GRID_H * GRID_W            # 198  (matches nn.Parameter size)
EMBED = 1024                       # matches reshape(..., 198, 1024)
PATCH_DIM = PATCH * PATCH          # single-channel patches -> 100
PATCH_PAD = 128                    # lane-aligned K / output dim
IMG_H, IMG_W = GRID_H * PATCH, GRID_W * PATCH   # (180, 110) as in seq2img
EPS = 1e-6


# ----------------------------- Pallas kernel --------------------------------
def _fused_kernel(p_ref, pr_ref, w1_ref, w2_ref, bs_ref,
                  we_ref, be_ref, wh_ref, bh_ref, o_ref):
    # p_ref / pr_ref : (N_TOK, PATCH_PAD)  f32 patches of img / ref
    # w1/w2/bs       : (N_TOK, 1)          f32 precomputed fusion weights
    # we_ref         : (PATCH_PAD, EMBED)  bf16 embed weight (zero-padded K)
    # be_ref         : (1, EMBED)          f32 embed bias
    # wh_ref         : (EMBED, PATCH_PAD)  bf16 head weight (zero-padded N)
    # bh_ref         : (1, PATCH_PAD)      f32 head bias (zero-padded)
    # Patch-space fusion (exact because the stand-in backbone is linear).
    mixed = w1_ref[...] * p_ref[...] + w2_ref[...] * pr_ref[...]        # VPU, f32
    comb = jnp.dot(mixed.astype(jnp.bfloat16), we_ref[...],
                   preferred_element_type=jnp.float32)                  # MXU
    comb = comb + bs_ref[...] * be_ref[...]                             # scaled shared bias
    out = jnp.dot(comb.astype(jnp.bfloat16), wh_ref[...],
                  preferred_element_type=jnp.float32)                   # MXU
    o_ref[...] = out + bh_ref[...]


def fused_fuse_embed_head(p_img, p_rf, params):
    """One pallas_call: weighted fusion (patch space) -> embed -> head.

    Exact rewrite of  head(fuse(embed(img), embed(ref)))  for a linear embed:
        comb = (p1*(P We + be) + p2*(Pr We + be)) / (p1+p2+eps)
             = (w1*P + w2*Pr) @ We + bscale*be,   w_i = p_i/(p1+p2+eps).
    """
    B = p_img.shape[0]
    p1 = params["param1"].reshape(N_TOK, 1).astype(jnp.float32)
    p2 = params["param2"].reshape(N_TOK, 1).astype(jnp.float32)
    denom = p1 + p2 + EPS
    w1 = p1 / denom                      # precomputed -> no in-kernel divide
    w2 = p2 / denom
    bscale = (p1 + p2) / denom           # scale of the shared embed bias

    kpad = PATCH_PAD - PATCH_DIM
    p_img = jnp.pad(p_img, ((0, 0), (0, 0), (0, kpad)))                    # K -> 128
    p_rf = jnp.pad(p_rf, ((0, 0), (0, 0), (0, kpad)))
    we = jnp.pad(params["embed_w"], ((0, kpad), (0, 0))).astype(jnp.bfloat16)
    be = params["embed_b"].astype(jnp.float32)
    wh = jnp.pad(params["head_w"], ((0, 0), (0, kpad))).astype(jnp.bfloat16)
    bh = jnp.pad(params["head_b"], ((0, 0), (0, kpad))).astype(jnp.float32)

    out = pl.pallas_call(
        _fused_kernel,
        out_shape=jax.ShapeDtypeStruct((B, N_TOK, PATCH_PAD), jnp.float32),
        grid=(B,),   # >=2 iterations -> both TensorCores busy on v7x
        in_specs=[
            pl.BlockSpec((None, N_TOK, PATCH_PAD), lambda i: (i, 0, 0)),
            pl.BlockSpec((None, N_TOK, PATCH_PAD), lambda i: (i, 0, 0)),
            pl.BlockSpec((N_TOK, 1), lambda i: (0, 0)),
            pl.BlockSpec((N_TOK, 1), lambda i: (0, 0)),
            pl.BlockSpec((N_TOK, 1), lambda i: (0, 0)),
            pl.BlockSpec((PATCH_PAD, EMBED), lambda i: (0, 0)),
            pl.BlockSpec((1, EMBED), lambda i: (0, 0)),
            pl.BlockSpec((EMBED, PATCH_PAD), lambda i: (0, 0)),
            pl.BlockSpec((1, PATCH_PAD), lambda i: (0, 0)),
        ],
        out_specs=pl.BlockSpec((None, N_TOK, PATCH_PAD), lambda i: (i, 0, 0)),
        compiler_params=pltpu.CompilerParams(
            dimension_semantics=("parallel",)),
    )(p_img, p_rf, w1, w2, bscale, we, be, wh, bh)

    return out[..., :PATCH_DIM]   # strip lane padding (exact: zero-padded weights)


# ----------------------------- plain-JAX glue -------------------------------
def pad_img(x):
    # pad bottom/right up to the (180, 110) patch grid, like ReconNet.pad
    B, C, H, W = x.shape
    hpad = IMG_H - H
    wpad = IMG_W - W
    xp = jnp.pad(x, ((0, 0), (0, 0), (0, hpad), (0, wpad)))
    return xp, wpad, hpad


def norm(x):
    # TODO(synk): ReconNet.norm exact semantics unavailable; per-sample
    # mean/std normalization assumed.
    mean = jnp.mean(x, axis=(1, 2, 3), keepdims=True)
    std = jnp.std(x, axis=(1, 2, 3), keepdims=True)
    return (x - mean) / (std + EPS), mean, std


def unnorm(x, mean, std):
    return x * (std + EPS) + mean


def unpad(x, wpad, hpad):
    return x[:, :, : IMG_H - hpad, : IMG_W - wpad]


def patchify(x):
    # (B, 1, 180, 110) -> (B, 198, 100)
    B = x.shape[0]
    x = x.reshape(B, 1, GRID_H, PATCH, GRID_W, PATCH)
    x = jnp.transpose(x, (0, 2, 4, 1, 3, 5))
    return x.reshape(B, N_TOK, PATCH_DIM)


def seq2img(tokens, hw):
    # (B, 198, 100) -> (B, 1, 180, 110)
    H, W = hw
    B = tokens.shape[0]
    x = tokens.reshape(B, GRID_H, GRID_W, PATCH, PATCH)
    x = jnp.transpose(x, (0, 1, 3, 2, 4))
    return x.reshape(B, 1, H, W)


# ----------------------------- module forward -------------------------------
def vitfuser_forward(img, ref, params):
    in_pad, wpad, hpad = pad_img(img)
    ref_pad, wpad, hpad = pad_img(ref)

    input_norm, mean, std = norm(in_pad.astype(jnp.float32))
    ref_norm, _, _ = norm(ref_pad.astype(jnp.float32))

    # TODO(synk): the real ViT encoder (recon_net.net, loaded from a .pt
    # checkpoint) is external; a deterministic linear patch-embedding stands
    # in.  Because it is linear, fusion is done in patch space inside the one
    # fused kernel (exact rewrite).  If a nonlinear backbone replaces it, the
    # kernel must be split back into embed(img), embed(ref), fuse+head.
    patches = patchify(input_norm)            # (B, 198, 100)
    patches_ref = patchify(ref_norm)          # (B, 198, 100)

    head_out = fused_fuse_embed_head(patches, patches_ref, params)  # (B,198,100)

    head_out_img = seq2img(head_out, (IMG_H, IMG_W))   # (B, 1, 180, 110)
    merged = unnorm(head_out_img, mean, std)           # un-norm with img stats
    im_out = unpad(merged, wpad, hpad)
    return im_out


# Pure-JAX f32 reference (unfused: embed(img), embed(ref), fuse, head).
def vitfuser_reference(img, ref, params):
    in_pad, wpad, hpad = pad_img(img)
    ref_pad, _, _ = pad_img(ref)
    input_norm, mean, std = norm(in_pad.astype(jnp.float32))
    ref_norm, _, _ = norm(ref_pad.astype(jnp.float32))
    feats = patchify(input_norm) @ params["embed_w"] + params["embed_b"]
    feats_r = patchify(ref_norm) @ params["embed_w"] + params["embed_b"]
    p1 = params["param1"].reshape(1, N_TOK, 1)
    p2 = params["param2"].reshape(1, N_TOK, 1)
    comb = (p1 * feats + p2 * feats_r) / (p1 + p2 + EPS)
    head_out = comb @ params["head_w"] + params["head_b"]
    merged = unnorm(seq2img(head_out, (IMG_H, IMG_W)), mean, std)
    return unpad(merged, wpad, hpad)


# ----------------------------- params ---------------------------------------
def init_params(key):
    k_ew, k_eb, k_hw, k_hb, k_p2 = jax.random.split(key, 5)
    return {
        "embed_w": 0.02 * jax.random.normal(k_ew, (PATCH_DIM, EMBED), jnp.float32),
        "embed_b": 0.01 * jax.random.normal(k_eb, (1, EMBED), jnp.float32),
        "head_w": 0.02 * jax.random.normal(k_hw, (EMBED, PATCH_DIM), jnp.float32),
        "head_b": 0.01 * jax.random.normal(k_hb, (1, PATCH_DIM), jnp.float32),
        # param1 ~ Normal(0.85, 0.0) == constant 0.85 ; param2 ~ Normal(0.15, 0.05)
        "param1": jnp.full((N_TOK,), 0.85, jnp.float32),
        "param2": 0.15 + 0.05 * jax.random.normal(k_p2, (N_TOK,), jnp.float32),
    }


# ----------------------------- main ------------------------------------------
if __name__ == "__main__":
    key = jax.random.PRNGKey(0)
    k_params, k_img, k_ref = jax.random.split(key, 3)
    params = init_params(k_params)

    B, C, H, W = 2, 1, 172, 104          # pads to (180, 110) -> 198 patches
    img = jax.random.normal(k_img, (B, C, H, W), jnp.float32)
    ref = jax.random.normal(k_ref, (B, C, H, W), jnp.float32)

    fwd = jax.jit(lambda i, r: vitfuser_forward(i, r, params))
    out = fwd(img, ref)
    jax.block_until_ready(out)

    assert out.shape == (B, C, H, W), out.shape
    assert out.dtype == jnp.float32

    # correctness vs. unfused f32 reference (loose tol: bf16 MXU operands)
    out_ref = vitfuser_reference(img, ref, params)
    max_err = float(jnp.max(jnp.abs(out - out_ref)))
    assert max_err < 5e-2, f"max abs err {max_err}"

    print("KERNEL_OK")
</pallas_src>

<mosaic_0001>
module attributes {stable_mosaic.version = 11 : i64} {
  func.func @_fused_kernel(%arg0: i32, %arg1: memref<1x198x128xf32, #tpu.memory_space<vmem>>, %arg2: memref<1x198x128xf32, #tpu.memory_space<vmem>>, %arg3: memref<198x1xf32, #tpu.memory_space<vmem>>, %arg4: memref<198x1xf32, #tpu.memory_space<vmem>>, %arg5: memref<198x1xf32, #tpu.memory_space<vmem>>, %arg6: memref<128x1024xbf16, #tpu.memory_space<vmem>>, %arg7: memref<1x1024xf32, #tpu.memory_space<vmem>>, %arg8: memref<1024x128xbf16, #tpu.memory_space<vmem>>, %arg9: memref<1x128xf32, #tpu.memory_space<vmem>>, %arg10: memref<1x198x128xf32, #tpu.memory_space<vmem>>) attributes {dimension_semantics = [#tpu.dimension_semantics<parallel>], iteration_bounds = array<i64: 2>, scalar_prefetch = 0 : i64, scratch_operands = 0 : i64, tpu.core_type = #tpu.core_type<tc>, window_params = [{transform_indices = @transform_0, window_bounds = array<i64: 1, 198, 128>}, {transform_indices = @transform_1, window_bounds = array<i64: 1, 198, 128>}, {pipeline_mode = #tpu.pipeline_mode<synchronous>, transform_indices = @transform_2, window_bounds = array<i64: 198, 1>}, {pipeline_mode = #tpu.pipeline_mode<synchronous>, transform_indices = @transform_3, window_bounds = array<i64: 198, 1>}, {pipeline_mode = #tpu.pipeline_mode<synchronous>, transform_indices = @transform_4, window_bounds = array<i64: 198, 1>}, {pipeline_mode = #tpu.pipeline_mode<synchronous>, transform_indices = @transform_5, window_bounds = array<i64: 128, 1024>}, {pipeline_mode = #tpu.pipeline_mode<synchronous>, transform_indices = @transform_6, window_bounds = array<i64: 1, 1024>}, {pipeline_mode = #tpu.pipeline_mode<synchronous>, transform_indices = @transform_7, window_bounds = array<i64: 1024, 128>}, {pipeline_mode = #tpu.pipeline_mode<synchronous>, transform_indices = @transform_8, window_bounds = array<i64: 1, 128>}, {transform_indices = @transform_9, window_bounds = array<i64: 1, 198, 128>}]} {
    %c0 = arith.constant 0 : index
    %c0_0 = arith.constant 0 : index
    %0 = vector.load %arg3[%c0, %c0_0] : memref<198x1xf32, #tpu.memory_space<vmem>>, vector<198x1xf32>
    %c0_1 = arith.constant 0 : index
    %c0_2 = arith.constant 0 : index
    %c0_3 = arith.constant 0 : index
    %1 = vector.load %arg1[%c0_1, %c0_2, %c0_3] : memref<1x198x128xf32, #tpu.memory_space<vmem>>, vector<1x198x128xf32>
    %2 = vector.shape_cast %1 : vector<1x198x128xf32> to vector<198x128xf32>
    %3 = vector.broadcast %0 : vector<198x1xf32> to vector<198x128xf32>
    %4 = arith.mulf %3, %2 : vector<198x128xf32>
    %c0_4 = arith.constant 0 : index
    %c0_5 = arith.constant 0 : index
    %5 = vector.load %arg4[%c0_4, %c0_5] : memref<198x1xf32, #tpu.memory_space<vmem>>, vector<198x1xf32>
    %c0_6 = arith.constant 0 : index
    %c0_7 = arith.constant 0 : index
    %c0_8 = arith.constant 0 : index
    %6 = vector.load %arg2[%c0_6, %c0_7, %c0_8] : memref<1x198x128xf32, #tpu.memory_space<vmem>>, vector<1x198x128xf32>
    %7 = vector.shape_cast %6 : vector<1x198x128xf32> to vector<198x128xf32>
    %8 = vector.broadcast %5 : vector<198x1xf32> to vector<198x128xf32>
    %9 = arith.mulf %8, %7 : vector<198x128xf32>
    %10 = arith.addf %4, %9 : vector<198x128xf32>
    %11 = arith.truncf %10 : vector<198x128xf32> to vector<198x128xbf16>
    %c0_9 = arith.constant 0 : index
    %c0_10 = arith.constant 0 : index
    %12 = vector.load %arg6[%c0_9, %c0_10] : memref<128x1024xbf16, #tpu.memory_space<vmem>>, vector<128x1024xbf16>
    %cst = arith.constant dense<0.000000e+00> : vector<198x1024xf32>
    %13 = tpu.matmul %11, %12, %cst {dimension_numbers = #tpu.dot_dimension_numbers<[1], [0], [0], [1], [0, 0, 1, 1], [], []>} : vector<198x128xbf16>, vector<128x1024xbf16>, vector<198x1024xf32> -> vector<198x1024xf32>
    %c0_11 = arith.constant 0 : index
    %c0_12 = arith.constant 0 : index
    %14 = vector.load %arg5[%c0_11, %c0_12] : memref<198x1xf32, #tpu.memory_space<vmem>>, vector<198x1xf32>
    %c0_13 = arith.constant 0 : index
    %c0_14 = arith.constant 0 : index
    %15 = vector.load %arg7[%c0_13, %c0_14] : memref<1x1024xf32, #tpu.memory_space<vmem>>, vector<1x1024xf32>
    %16 = vector.broadcast %14 : vector<198x1xf32> to vector<198x1024xf32>
    %17 = vector.broadcast %15 : vector<1x1024xf32> to vector<198x1024xf32>
    %18 = arith.mulf %16, %17 : vector<198x1024xf32>
    %19 = arith.addf %13, %18 : vector<198x1024xf32>
    %20 = arith.truncf %19 : vector<198x1024xf32> to vector<198x1024xbf16>
    %c0_15 = arith.constant 0 : index
    %c0_16 = arith.constant 0 : index
    %21 = vector.load %arg8[%c0_15, %c0_16] : memref<1024x128xbf16, #tpu.memory_space<vmem>>, vector<1024x128xbf16>
    %cst_17 = arith.constant dense<0.000000e+00> : vector<198x128xf32>
    %22 = tpu.matmul %20, %21, %cst_17 {dimension_numbers = #tpu.dot_dimension_numbers<[1], [0], [0], [1], [0, 0, 1, 1], [], []>} : vector<198x1024xbf16>, vector<1024x128xbf16>, vector<198x128xf32> -> vector<198x128xf32>
    %c0_18 = arith.constant 0 : index
    %c0_19 = arith.constant 0 : index
    %23 = vector.load %arg9[%c0_18, %c0_19] : memref<1x128xf32, #tpu.memory_space<vmem>>, vector<1x128xf32>
    %24 = vector.broadcast %23 : vector<1x128xf32> to vector<198x128xf32>
    %25 = arith.addf %22, %24 : vector<198x128xf32>
    %c0_20 = arith.constant 0 : index
    %c0_21 = arith.constant 0 : index
    %c0_22 = arith.constant 0 : index
    %26 = vector.load %arg10[%c0_20, %c0_21, %c0_22] : memref<1x198x128xf32, #tpu.memory_space<vmem>>, vector<1x198x128xf32>
    %27 = vector.shape_cast %26 : vector<1x198x128xf32> to vector<198x128xf32>
    %28 = vector.shape_cast %25 : vector<198x128xf32> to vector<1x198x128xf32>
    tpu.vector_store %arg10[%c0_20, %c0_21, %c0_22], %28 {strides = array<i32>} : memref<1x198x128xf32, #tpu.memory_space<vmem>>, vector<1x198x128xf32>,
    return
  }
  func.func @transform_0(%arg0: i32) -> (i32, i32, i32) {
    %c0_i32 = arith.constant 0 : i32
    %c0_i32_0 = arith.constant 0 : i32
    %c0_i32_1 = arith.constant 0 : i32
    return %arg0, %c0_i32, %c0_i32_0 : i32, i32, i32
  }
  func.func @transform_1(%arg0: i32) -> (i32, i32, i32) {
    %c0_i32 = arith.constant 0 : i32
    %c0_i32_0 = arith.constant 0 : i32
    %c0_i32_1 = arith.constant 0 : i32
    return %arg0, %c0_i32, %c0_i32_0 : i32, i32, i32
  }
  func.func @transform_2(%arg0: i32) -> (i32, i32) {
    %c0_i32 = arith.constant 0 : i32
    %c0_i32_0 = arith.constant 0 : i32
    %c0_i32_1 = arith.constant 0 : i32
    return %c0_i32, %c0_i32_0 : i32, i32
  }
  func.func @transform_3(%arg0: i32) -> (i32, i32) {
    %c0_i32 = arith.constant 0 : i32
    %c0_i32_0 = arith.constant 0 : i32
    %c0_i32_1 = arith.constant 0 : i32
    return %c0_i32, %c0_i32_0 : i32, i32
  }
  func.func @transform_4(%arg0: i32) -> (i32, i32) {
    %c0_i32 = arith.constant 0 : i32
    %c0_i32_0 = arith.constant 0 : i32
    %c0_i32_1 = arith.constant 0 : i32
    return %c0_i32, %c0_i32_0 : i32, i32
  }
  func.func @transform_5(%arg0: i32) -> (i32, i32) {
    %c0_i32 = arith.constant 0 : i32
    %c0_i32_0 = arith.constant 0 : i32
    %c0_i32_1 = arith.constant 0 : i32
    return %c0_i32, %c0_i32_0 : i32, i32
  }
  func.func @transform_6(%arg0: i32) -> (i32, i32) {
    %c0_i32 = arith.constant 0 : i32
    %c0_i32_0 = arith.constant 0 : i32
    %c0_i32_1 = arith.constant 0 : i32
    return %c0_i32, %c0_i32_0 : i32, i32
  }
  func.func @transform_7(%arg0: i32) -> (i32, i32) {
    %c0_i32 = arith.constant 0 : i32
    %c0_i32_0 = arith.constant 0 : i32
    %c0_i32_1 = arith.constant 0 : i32
    return %c0_i32, %c0_i32_0 : i32, i32
  }
  func.func @transform_8(%arg0: i32) -> (i32, i32) {
    %c0_i32 = arith.constant 0 : i32
    %c0_i32_0 = arith.constant 0 : i32
    %c0_i32_1 = arith.constant 0 : i32
    return %c0_i32, %c0_i32_0 : i32, i32
  }
  func.func @transform_9(%arg0: i32) -> (i32, i32, i32) {
    %c0_i32 = arith.constant 0 : i32
    %c0_i32_0 = arith.constant 0 : i32
    %c0_i32_1 = arith.constant 0 : i32
    return %arg0, %c0_i32, %c0_i32_0 : i32, i32, i32
  }
}

</mosaic_0001>

<llo_original>
// kernel: _lambda_.1
$region0: #{_lambda_.1}
  #allocation0 [shape = 'u32[]', space=smem, size = 0x4, offset = 0x4, fixed_abs, tag = 'smem constant byte address 0x4 - core index']
  #allocation1 [shape = 'u32[72,128]{1,0:T(1,128)}', space=vmem, size = 0x9000, scoped, tag = 'internal scratch']
  %s0 = inlined_call_operand.vmem [shape: f32[2,198,128], index: 0, kind: input, shape index: {}]
  %s1 = inlined_call_operand.vmem [shape: f32[2,198,128], index: 1, kind: input, shape index: {}]
  %s2 = inlined_call_operand.vmem [shape: f32[198,1], index: 2, kind: input, shape index: {}]
  %s3 = inlined_call_operand.vmem [shape: f32[198,1], index: 3, kind: input, shape index: {}]
  %s4 = inlined_call_operand.vmem [shape: f32[198,1], index: 4, kind: input, shape index: {}]
  %s5 = inlined_call_operand.vmem [shape: bf16[128,1024], index: 5, kind: input, shape index: {}]
  %s6 = inlined_call_operand.vmem [shape: f32[1,1024], index: 6, kind: input, shape index: {}]
  %s7 = inlined_call_operand.vmem [shape: bf16[1024,128], index: 7, kind: input, shape index: {}]
  %s8 = inlined_call_operand.vmem [shape: f32[1,128], index: 8, kind: input, shape index: {}]
  %s9 = inlined_call_operand.vmem [shape: f32[2,198,128], index: 9, kind: output, shape index: {}]
  %s10 = sld [smem:[#allocation0]]
  $region69: #{_lambda_.1} parent=0
    _
  %s12 = ssub.s32 1, %s10
  %s13 = scalar_select 0, %s12, %s10
  loop: start=0, step=1, limit=4
  $region2: #{_lambda_.1} parent=0 // loop_pre_header
    _
  $region3: #{_lambda_.1} parent=0 // loop_header
    %s15 = sphi 0, %s19
    %p16 = scmp.ge.s32.totalorder %s15, 4
    %s25 = sphi 0, %s27
    %s28 = sphi 0, %s25
    %s29 = sphi 0, %s28
    %s45 = sphi 0, %s29
    %s51 = sphi 0, %s53
    %s54 = sphi 0, %s51
    %s55 = sphi 0, %s54
    %s71 = sphi 0, %s55
    %s75 = sphi 0, %s75
    %s77 = sphi 0, %s75
    %s78 = sphi 0, %s77
    %s92 = sphi 0, %s78
    %s96 = sphi 0, %s96
    %s98 = sphi 0, %s96
    %s99 = sphi 0, %s98
    %s113 = sphi 0, %s99
    %s117 = sphi 0, %s117
    %s119 = sphi 0, %s117
    %s120 = sphi 0, %s119
    %s134 = sphi 0, %s120
    %s138 = sphi 0, %s138
    %s140 = sphi 0, %s138
    %s141 = sphi 0, %s140
    %s155 = sphi 0, %s141
    %s159 = sphi 0, %s159
    %s161 = sphi 0, %s159
    %s162 = sphi 0, %s161
    %s176 = sphi 0, %s162
    %s180 = sphi 0, %s180
    %s182 = sphi 0, %s180
    %s183 = sphi 0, %s182
    %s197 = sphi 0, %s183
    %s201 = sphi 0, %s201
    %s203 = sphi 0, %s201
    %s204 = sphi 0, %s203
    %s218 = sphi 0, %s204
    %s224 = sphi 0, %s226
    %s227 = sphi 0, %s224
    %s228 = sphi 0, %s227
    %s244 = sphi 0, %s228
  $region4: #{_lambda_.1} parent=0 // loop_header_branch
    %18 = sbr.rel (%p16) target = $region8
  $region5: #{_lambda_.1} parent=0 // loop_body
    %s20 = ssub.s32 %s15, 1
    %s21 = ssub.s32 %s15, 2
    %s22 = sadd.s32 %s15, 1
    %s23 = ssub.s32 %s15, %s22
    %p24 = scmp.eq.s32.totalorder %s23, 0
    %s26 = sadd.s32 %s25, 1
    %s27 = scalar_select %p24, %s25, %s26
    %p30 = pneg %p24
    %p31 = scmp.eq.s32.totalorder %s15, 1
    %p32 = por %p30, %p31
    %p33 = scmp.ne.s32.totalorder %s25, %s28
    %p34 = scmp.eq.s32.totalorder %s15, 0
    %p35 = por %p33, %p34
    %p36 = scmp.ne.s32.totalorder %s25, %s28
    %p37 = scmp.eq.s32.totalorder %s20, 1
    %p38 = por %p36, %p37
    %p39 = scmp.ne.s32.totalorder %s28, %s29
    %p40 = scmp.eq.s32.totalorder %s20, 0
    %p41 = por %p39, %p40
    %p42 = scmp.ne.s32.totalorder %s28, %s29
    %p43 = scmp.eq.s32.totalorder %s21, 1
    %p44 = por %p42, %p43
    %p46 = scmp.ne.s32.totalorder %s29, %s45
    %p47 = scmp.eq.s32.totalorder %s21, 0
    %p48 = por %p46, %p47
    %s49 = ssub.s32 %s15, %s22
    %p50 = scmp.eq.s32.totalorder %s49, 0
    %s52 = sadd.s32 %s51, 1
    %s53 = scalar_select %p50, %s51, %s52
    %p56 = pneg %p50
    %p57 = scmp.eq.s32.totalorder %s15, 1
    %p58 = por %p56, %p57
    %p59 = scmp.ne.s32.totalorder %s51, %s54
    %p60 = scmp.eq.s32.totalorder %s15, 0
    %p61 = por %p59, %p60
    %p62 = scmp.ne.s32.totalorder %s51, %s54
    %p63 = scmp.eq.s32.totalorder %s20, 1
    %p64 = por %p62, %p63
    %p65 = scmp.ne.s32.totalorder %s54, %s55
    %p66 = scmp.eq.s32.totalorder %s20, 0
    %p67 = por %p65, %p66
    %p68 = scmp.ne.s32.totalorder %s54, %s55
    %p69 = scmp.eq.s32.totalorder %s21, 1
    %p70 = por %p68, %p69
    %p72 = scmp.ne.s32.totalorder %s55, %s71
    %p73 = scmp.eq.s32.totalorder %s21, 0
    %p74 = por %p72, %p73
    %s76 = sadd.s32 %s75, 1
    %p79 = scmp.eq.s32.totalorder %s15, 1
    %p80 = scmp.ne.s32.totalorder %s75, %s77
    %p81 = scmp.eq.s32.totalorder %s15, 0
    %p82 = por %p80, %p81
    %p83 = scmp.ne.s32.totalorder %s75, %s77
    %p84 = scmp.eq.s32.totalorder %s20, 1
    %p85 = por %p83, %p84
    %p86 = scmp.ne.s32.totalorder %s77, %s78
    %p87 = scmp.eq.s32.totalorder %s20, 0
    %p88 = por %p86, %p87
    %p89 = scmp.ne.s32.totalorder %s77, %s78
    %p90 = scmp.eq.s32.totalorder %s21, 1
    %p91 = por %p89, %p90
    %p93 = scmp.ne.s32.totalorder %s78, %s92
    %p94 = scmp.eq.s32.totalorder %s21, 0
    %p95 = por %p93, %p94
    %s97 = sadd.s32 %s96, 1
    %p100 = scmp.eq.s32.totalorder %s15, 1
    %p101 = scmp.ne.s32.totalorder %s96, %s98
    %p102 = scmp.eq.s32.totalorder %s15, 0
    %p103 = por %p101, %p102
    %p104 = scmp.ne.s32.totalorder %s96, %s98
    %p105 = scmp.eq.s32.totalorder %s20, 1
    %p106 = por %p104, %p105
    %p107 = scmp.ne.s32.totalorder %s98, %s99
    %p108 = scmp.eq.s32.totalorder %s20, 0
    %p109 = por %p107, %p108
    %p110 = scmp.ne.s32.totalorder %s98, %s99
    %p111 = scmp.eq.s32.totalorder %s21, 1
    %p112 = por %p110, %p111
    %p114 = scmp.ne.s32.totalorder %s99, %s113
    %p115 = scmp.eq.s32.totalorder %s21, 0
    %p116 = por %p114, %p115
    %s118 = sadd.s32 %s117, 1
    %p121 = scmp.eq.s32.totalorder %s15, 1
    %p122 = scmp.ne.s32.totalorder %s117, %s119
    %p123 = scmp.eq.s32.totalorder %s15, 0
    %p124 = por %p122, %p123
    %p125 = scmp.ne.s32.totalorder %s117, %s119
    %p126 = scmp.eq.s32.totalorder %s20, 1
    %p127 = por %p125, %p126
    %p128 = scmp.ne.s32.totalorder %s119, %s120
    %p129 = scmp.eq.s32.totalorder %s20, 0
    %p130 = por %p128, %p129
    %p131 = scmp.ne.s32.totalorder %s119, %s120
    %p132 = scmp.eq.s32.totalorder %s21, 1
    %p133 = por %p131, %p132
    %p135 = scmp.ne.s32.totalorder %s120, %s134
    %p136 = scmp.eq.s32.totalorder %s21, 0
    %p137 = por %p135, %p136
    %s139 = sadd.s32 %s138, 1
    %p142 = scmp.eq.s32.totalorder %s15, 1
    %p143 = scmp.ne.s32.totalorder %s138, %s140
    %p144 = scmp.eq.s32.totalorder %s15, 0
    %p145 = por %p143, %p144
    %p146 = scmp.ne.s32.totalorder %s138, %s140
    %p147 = scmp.eq.s32.totalorder %s20, 1
    %p148 = por %p146, %p147
    %p149 = scmp.ne.s32.totalorder %s140, %s141
    %p150 = scmp.eq.s32.totalorder %s20, 0
    %p151 = por %p149, %p150
    %p152 = scmp.ne.s32.totalorder %s140, %s141
    %p153 = scmp.eq.s32.totalorder %s21, 1
    %p154 = por %p152, %p153
    %p156 = scmp.ne.s32.totalorder %s141, %s155
    %p157 = scmp.eq.s32.totalorder %s21, 0
    %p158 = por %p156, %p157
    %s160 = sadd.s32 %s159, 1
    %p163 = scmp.eq.s32.totalorder %s15, 1
    %p164 = scmp.ne.s32.totalorder %s159, %s161
    %p165 = scmp.eq.s32.totalorder %s15, 0
    %p166 = por %p164, %p165
    %p167 = scmp.ne.s32.totalorder %s159, %s161
    %p168 = scmp.eq.s32.totalorder %s20, 1
    %p169 = por %p167, %p168
    %p170 = scmp.ne.s32.totalorder %s161, %s162
    %p171 = scmp.eq.s32.totalorder %s20, 0
    %p172 = por %p170, %p171
    %p173 = scmp.ne.s32.totalorder %s161, %s162
    %p174 = scmp.eq.s32.totalorder %s21, 1
    %p175 = por %p173, %p174
    %p177 = scmp.ne.s32.totalorder %s162, %s176
    %p178 = scmp.eq.s32.totalorder %s21, 0
    %p179 = por %p177, %p178
    %s181 = sadd.s32 %s180, 1
    %p184 = scmp.eq.s32.totalorder %s15, 1
    %p185 = scmp.ne.s32.totalorder %s180, %s182
    %p186 = scmp.eq.s32.totalorder %s15, 0
    %p187 = por %p185, %p186
    %p188 = scmp.ne.s32.totalorder %s180, %s182
    %p189 = scmp.eq.s32.totalorder %s20, 1
    %p190 = por %p188, %p189
    %p191 = scmp.ne.s32.totalorder %s182, %s183
    %p192 = scmp.eq.s32.totalorder %s20, 0
    %p193 = por %p191, %p192
    %p194 = scmp.ne.s32.totalorder %s182, %s183
    %p195 = scmp.eq.s32.totalorder %s21, 1
    %p196 = por %p194, %p195
    %p198 = scmp.ne.s32.totalorder %s183, %s197
    %p199 = scmp.eq.s32.totalorder %s21, 0
    %p200 = por %p198, %p199
    %s202 = sadd.s32 %s201, 1
    %p205 = scmp.eq.s32.totalorder %s15, 1
    %p206 = scmp.ne.s32.totalorder %s201, %s203
    %p207 = scmp.eq.s32.totalorder %s15, 0
    %p208 = por %p206, %p207
    %p209 = scmp.ne.s32.totalorder %s201, %s203
    %p210 = scmp.eq.s32.totalorder %s20, 1
    %p211 = por %p209, %p210
    %p212 = scmp.ne.s32.totalorder %s203, %s204
    %p213 = scmp.eq.s32.totalorder %s20, 0
    %p214 = por %p212, %p213
    %p215 = scmp.ne.s32.totalorder %s203, %s204
    %p216 = scmp.eq.s32.totalorder %s21, 1
    %p217 = por %p215, %p216
    %p219 = scmp.ne.s32.totalorder %s204, %s218
    %p220 = scmp.eq.s32.totalorder %s21, 0
    %p221 = por %p219, %p220
    %s222 = ssub.s32 %s15, %s22
    %p223 = scmp.eq.s32.totalorder %s222, 0
    %s225 = sadd.s32 %s224, 1
    %s226 = scalar_select %p223, %s224, %s225
    %p229 = pneg %p223
    %p230 = scmp.eq.s32.totalorder %s15, 1
    %p231 = por %p229, %p230
    %p232 = scmp.ne.s32.totalorder %s224, %s227
    %p233 = scmp.eq.s32.totalorder %s15, 0
    %p234 = por %p232, %p233
    %p235 = scmp.ne.s32.totalorder %s224, %s227
    %p236 = scmp.eq.s32.totalorder %s20, 1
    %p237 = por %p235, %p236
    %p238 = scmp.ne.s32.totalorder %s227, %s228
    %p239 = scmp.eq.s32.totalorder %s20, 0
    %p240 = por %p238, %p239
    %p241 = scmp.ne.s32.totalorder %s227, %s228
    %p242 = scmp.eq.s32.totalorder %s21, 1
    %p243 = por %p241, %p242
    %p245 = scmp.ne.s32.totalorder %s228, %s244
    %p246 = scmp.eq.s32.totalorder %s21, 0
    %p247 = por %p245, %p246
    %p248 = scmp.le.s32.totalorder 1, %s15
    %p249 = scmp.lt.s32.totalorder %s15, 3
    %p250 = pnand %p248, %p249
    %p251 = pneg %p250
    // Predicated region
    $region9: #{_lambda_.1} parent=5 // pred_check
      _
    $region10: #{_lambda_.1} parent=5 // pred_check_branch
      %253 = sbr.rel (%p250) target = $region12
    $region11: #{_lambda_.1} parent=5 // pred_region
      %s254 = ssub.s32 %s15, 1
      // Predicated region
      $region13: #{_lambda_.1} parent=11 // pred_check
        %p255 = pneg %p88
      $region14: #{_lambda_.1} parent=11 // pred_check_branch
        %257 = sbr.rel (%p255) target = $region16
      $region15: #{_lambda_.1} parent=11 // pred_region
        _
      $region16: #{_lambda_.1} parent=11 // pred_fallthru
        _
      // Predicated region
      $region17: #{_lambda_.1} parent=11 // pred_check
        %p258 = pneg %p109
      $region18: #{_lambda_.1} parent=11 // pred_check_branch
        %260 = sbr.rel (%p258) target = $region20
      $region19: #{_lambda_.1} parent=11 // pred_region
        _
      $region20: #{_lambda_.1} parent=11 // pred_fallthru
        _
      // Predicated region
      $region21: #{_lambda_.1} parent=11 // pred_check
        %p261 = pneg %p130
      $region22: #{_lambda_.1} parent=11 // pred_check_branch
        %263 = sbr.rel (%p261) target = $region24
      $region23: #{_lambda_.1} parent=11 // pred_region
        _
      $region24: #{_lambda_.1} parent=11 // pred_fallthru
        _
      // Predicated region
      $region25: #{_lambda_.1} parent=11 // pred_check
        %p264 = pneg %p151
      $region26: #{_lambda_.1} parent=11 // pred_check_branch
        %266 = sbr.rel (%p264) target = $region28
      $region27: #{_lambda_.1} parent=11 // pred_region
        _
      $region28: #{_lambda_.1} parent=11 // pred_fallthru
        _
      // Predicated region
      $region29: #{_lambda_.1} parent=11 // pred_check
        %p267 = pneg %p172
      $region30: #{_lambda_.1} parent=11 // pred_check_branch
        %269 = sbr.rel (%p267) target = $region32
      $region31: #{_lambda_.1} parent=11 // pred_region
        _
      $region32: #{_lambda_.1} parent=11 // pred_fallthru
        _
      // Predicated region
      $region33: #{_lambda_.1} parent=11 // pred_check
        %p270 = pneg %p193
      $region34: #{_lambda_.1} parent=11 // pred_check_branch
        %272 = sbr.rel (%p270) target = $region36
      $region35: #{_lambda_.1} parent=11 // pred_region
        _
      $region36: #{_lambda_.1} parent=11 // pred_fallthru
        _
      // Predicated region
      $region37: #{_lambda_.1} parent=11 // pred_check
        %p273 = pneg %p214
      $region38: #{_lambda_.1} parent=11 // pred_check_branch
        %275 = sbr.rel (%p273) target = $region40
      $region39: #{_lambda_.1} parent=11 // pred_region
        _
      $region40: #{_lambda_.1} parent=11 // pred_fallthru
        _
    $region12: #{_lambda_.1} parent=5 // pred_fallthru
      _
    %p276 = scmp.lt.s32.totalorder %s15, 2
    // Predicated region
    $region41: #{_lambda_.1} parent=5 // pred_check
      %p277 = pneg %p276
    $region42: #{_lambda_.1} parent=5 // pred_check_branch
      %279 = sbr.rel (%p277) target = $region44
    $region43: #{_lambda_.1} parent=5 // pred_region
      // Predicated region
      $region45: #{_lambda_.1} parent=43 // pred_check
        %p280 = pneg %p35
      $region46: #{_lambda_.1} parent=43 // pred_check_branch
        %282 = sbr.rel (%p280) target = $region48
      $region47: #{_lambda_.1} parent=43 // pred_region
        %p283 = scmp.lt.s32.totalorder %s15, 1
        %s284 = scalar_select %p283, %s15, 1
        %s285 = smul.addr %s284, 25
        %s286 = smul.addr %s285, 8
        %s287 = scalar_lea.vmem %s0, %s286
      $region48: #{_lambda_.1} parent=43 // pred_fallthru
        _
      // Predicated region
      $region49: #{_lambda_.1} parent=43 // pred_check
        %p288 = pneg %p61
      $region50: #{_lambda_.1} parent=43 // pred_check_branch
        %290 = sbr.rel (%p288) target = $region52
      $region51: #{_lambda_.1} parent=43 // pred_region
        %p291 = scmp.lt.s32.totalorder %s15, 1
        %s292 = scalar_select %p291, %s15, 1
        %s293 = smul.addr %s292, 25
        %s294 = smul.addr %s293, 8
        %s295 = scalar_lea.vmem %s1, %s294
      $region52: #{_lambda_.1} parent=43 // pred_fallthru
        _
    $region44: #{_lambda_.1} parent=5 // pred_fallthru
      _
    %p296 = scmp.le.s32.totalorder 1, %s15
    %p297 = scmp.lt.s32.totalorder %s15, 3
    %p298 = pnand %p296, %p297
    %p299 = pneg %p298
    // Predicated region
    $region53: #{_lambda_.1} parent=5 // pred_check
      _
    $region54: #{_lambda_.1} parent=5 // pred_check_branch
      %301 = sbr.rel (%p298) target = $region56
    $region55: #{_lambda_.1} parent=5 // pred_region
      %s302 = ssub.s32 %s15, 1
      %p303 = scmp.lt.s32.totalorder %s20, 1
      %s304 = scalar_select %p303, %s20, 1
      %s305 = smul.addr %s304, 25
      %s306 = smul.addr %s305, 8
      %s307 = scalar_lea.vmem %s0, %s306
      %p308 = pneg %p41
      %p309 = pneg %p38
      %p310 = scmp.lt.s32.totalorder %s20, 1
      %s311 = scalar_select %p310, %s20, 1
      %s312 = smul.addr %s311, 25
      %s313 = smul.addr %s312, 8
      %s314 = scalar_lea.vmem %s1, %s313
      %p315 = pneg %p67
      %p316 = pneg %p64
      %p317 = pneg %p88
      %p318 = pneg %p85
      %p319 = pneg %p109
      %p320 = pneg %p106
      %p321 = pneg %p130
      %p322 = pneg %p127
      %p323 = pneg %p151
      %p324 = pneg %p148
      %p325 = pneg %p172
      %p326 = pneg %p169
      %p327 = pneg %p193
      %p328 = pneg %p190
      %p329 = pneg %p214
      %p330 = pneg %p211
      %p331 = pneg %p240
      %p332 = pneg %p237
      %p333 = scmp.lt.s32.totalorder %s20, 1
      %s334 = scalar_select %p333, %s20, 1
      %s335 = smul.addr %s334, 25
      %s336 = smul.addr %s335, 8
      %s337 = scalar_lea.vmem %s9, %s336
      %p338 = scmp.lt.s32.totalorder %s20, 1
      %s339 = scalar_select %p338, %s20, 1
      %s340 = smul.addr %s339, 25
      %s341 = smul.addr %s340, 8
      %s342 = scalar_lea.vmem %s0, %s341
      %p343 = scmp.lt.s32.totalorder %s20, 1
      %s344 = scalar_select %p343, %s20, 1
      %s345 = smul.addr %s344, 25
      %s346 = smul.addr %s345, 8
      %s347 = scalar_lea.vmem %s1, %s346
      %p348 = scmp.lt.s32.totalorder %s20, 1
      %s349 = scalar_select %p348, %s20, 1
      %s350 = smul.addr %s349, 25
      %s351 = smul.addr %s350, 8
      %s352 = scalar_lea.vmem %s9, %s351
      %v353 = vld [vmem:[%s2] sm:$0xff]
      %v354 = vld [vmem:[%s2 + $0x8] sm:$0xff]
      %v355 = vld [vmem:[%s2 + $0x10] sm:$0xff]
      %v356 = vld [vmem:[%s2 + $0x18] sm:$0xff]
      %v357 = vld [vmem:[%s2 + $0x20] sm:$0xff]
      %v358 = vld [vmem:[%s2 + $0x28] sm:$0xff]
      %v359 = vld [vmem:[%s2 + $0x30] sm:$0xff]
      %v360 = vld [vmem:[%s2 + $0x38] sm:$0xff]
      %v361 = vld [vmem:[%s2 + $0x40] sm:$0xff]
      %v362 = vld [vmem:[%s2 + $0x48] sm:$0xff]
      %v363 = vld [vmem:[%s2 + $0x50] sm:$0xff]
      %v364 = vld [vmem:[%s2 + $0x58] sm:$0xff]
      %v365 = vld [vmem:[%s2 + $0x60] sm:$0xff]
      %v366 = vld [vmem:[%s2 + $0x68] sm:$0xff]
      %v367 = vld [vmem:[%s2 + $0x70] sm:$0xff]
      %v368 = vld [vmem:[%s2 + $0x78] sm:$0xff]
      %v369 = vld [vmem:[%s2 + $0x80] sm:$0xff]
      %v370 = vld [vmem:[%s2 + $0x88] sm:$0xff]
      %v371 = vld [vmem:[%s2 + $0x90] sm:$0xff]
      %v372 = vld [vmem:[%s2 + $0x98] sm:$0xff]
      %v373 = vld [vmem:[%s2 + $0xa0] sm:$0xff]
      %v374 = vld [vmem:[%s2 + $0xa8] sm:$0xff]
      %v375 = vld [vmem:[%s2 + $0xb0] sm:$0xff]
      %v376 = vld [vmem:[%s2 + $0xb8] sm:$0xff]
      %v377 = vld [vmem:[%s2 + $0xc0] sm:$0x3f]
      %v378 = vld [vmem:[%s342] sm:$0xff]
      %v379 = vld [vmem:[%s342 + $0x8] sm:$0xff]
      %v380 = vld [vmem:[%s342 + $0x10] sm:$0xff]
      %v381 = vld [vmem:[%s342 + $0x18] sm:$0xff]
      %v382 = vld [vmem:[%s342 + $0x20] sm:$0xff]
      %v383 = vld [vmem:[%s342 + $0x28] sm:$0xff]
      %v384 = vld [vmem:[%s342 + $0x30] sm:$0xff]
      %v385 = vld [vmem:[%s342 + $0x38] sm:$0xff]
      %v386 = vld [vmem:[%s342 + $0x40] sm:$0xff]
      %v387 = vld [vmem:[%s342 + $0x48] sm:$0xff]
      %v388 = vld [vmem:[%s342 + $0x50] sm:$0xff]
      %v389 = vld [vmem:[%s342 + $0x58] sm:$0xff]
      %v390 = vld [vmem:[%s342 + $0x60] sm:$0xff]
      %v391 = vld [vmem:[%s342 + $0x68] sm:$0xff]
      %v392 = vld [vmem:[%s342 + $0x70] sm:$0xff]
      %v393 = vld [vmem:[%s342 + $0x78] sm:$0xff]
      %v394 = vld [vmem:[%s342 + $0x80] sm:$0xff]
      %v395 = vld [vmem:[%s342 + $0x88] sm:$0xff]
      %v396 = vld [vmem:[%s342 + $0x90] sm:$0xff]
      %v397 = vld [vmem:[%s342 + $0x98] sm:$0xff]
      %v398 = vld [vmem:[%s342 + $0xa0] sm:$0xff]
      %v399 = vld [vmem:[%s342 + $0xa8] sm:$0xff]
      %v400 = vld [vmem:[%s342 + $0xb0] sm:$0xff]
      %v401 = vld [vmem:[%s342 + $0xb8] sm:$0xff]
      %v402 = vld [vmem:[%s342 + $0xc0] sm:$0x3f]
      %404 = vset.pattern.permute.xlu0 0
      %405 = vperm.xlu0 %404, %v353
      %v406 = vpop.permute.xlu0 %405
      %409 = vset.pattern.permute.xlu0 0
      %410 = vperm.xlu0 %409, %v354
      %v411 = vpop.permute.xlu0 %410
      %414 = vset.pattern.permute.xlu0 0
      %415 = vperm.xlu0 %414, %v355
      %v416 = vpop.permute.xlu0 %415
      %419 = vset.pattern.permute.xlu0 0
      %420 = vperm.xlu0 %419, %v356
      %v421 = vpop.permute.xlu0 %420
      %424 = vset.pattern.permute.xlu0 0
      %425 = vperm.xlu0 %424, %v357
      %v426 = vpop.permute.xlu0 %425
      %429 = vset.pattern.permute.xlu0 0
      %430 = vperm.xlu0 %429, %v358
      %v431 = vpop.permute.xlu0 %430
      %434 = vset.pattern.permute.xlu0 0
      %435 = vperm.xlu0 %434, %v359
      %v436 = vpop.permute.xlu0 %435
      %439 = vset.pattern.permute.xlu0 0
      %440 = vperm.xlu0 %439, %v360
      %v441 = vpop.permute.xlu0 %440
      %444 = vset.pattern.permute.xlu0 0
      %445 = vperm.xlu0 %444, %v361
      %v446 = vpop.permute.xlu0 %445
      %449 = vset.pattern.permute.xlu0 0
      %450 = vperm.xlu0 %449, %v362
      %v451 = vpop.permute.xlu0 %450
      %454 = vset.pattern.permute.xlu0 0
      %455 = vperm.xlu0 %454, %v363
      %v456 = vpop.permute.xlu0 %455
      %459 = vset.pattern.permute.xlu0 0
      %460 = vperm.xlu0 %459, %v364
      %v461 = vpop.permute.xlu0 %460
      %464 = vset.pattern.permute.xlu0 0
      %465 = vperm.xlu0 %464, %v365
      %v466 = vpop.permute.xlu0 %465
      %469 = vset.pattern.permute.xlu0 0
      %470 = vperm.xlu0 %469, %v366
      %v471 = vpop.permute.xlu0 %470
      %474 = vset.pattern.permute.xlu0 0
      %475 = vperm.xlu0 %474, %v367
      %v476 = vpop.permute.xlu0 %475
      %479 = vset.pattern.permute.xlu0 0
      %480 = vperm.xlu0 %479, %v368
      %v481 = vpop.permute.xlu0 %480
      %484 = vset.pattern.permute.xlu0 0
      %485 = vperm.xlu0 %484, %v369
      %v486 = vpop.permute.xlu0 %485
      %489 = vset.pattern.permute.xlu0 0
      %490 = vperm.xlu0 %489, %v370
      %v491 = vpop.permute.xlu0 %490
      %494 = vset.pattern.permute.xlu0 0
      %495 = vperm.xlu0 %494, %v371
      %v496 = vpop.permute.xlu0 %495
      %499 = vset.pattern.permute.xlu0 0
      %500 = vperm.xlu0 %499, %v372
      %v501 = vpop.permute.xlu0 %500
      %504 = vset.pattern.permute.xlu0 0
      %505 = vperm.xlu0 %504, %v373
      %v506 = vpop.permute.xlu0 %505
      %509 = vset.pattern.permute.xlu0 0
      %510 = vperm.xlu0 %509, %v374
      %v511 = vpop.permute.xlu0 %510
      %514 = vset.pattern.permute.xlu0 0
      %515 = vperm.xlu0 %514, %v375
      %v516 = vpop.permute.xlu0 %515
      %519 = vset.pattern.permute.xlu0 0
      %520 = vperm.xlu0 %519, %v376
      %v521 = vpop.permute.xlu0 %520
      %524 = vset.pattern.permute.xlu0 0
      %525 = vperm.xlu0 %524, %v377
      %v526 = vpop.permute.xlu0 %525
      %v528 = vmul.f32 %v406, %v378
      %v529 = vmul.f32 %v411, %v379
      %v530 = vmul.f32 %v416, %v380
      %v531 = vmul.f32 %v421, %v381
      %v532 = vmul.f32 %v426, %v382
      %v533 = vmul.f32 %v431, %v383
      %v534 = vmul.f32 %v436, %v384
      %v535 = vmul.f32 %v441, %v385
      %v536 = vmul.f32 %v446, %v386
      %v537 = vmul.f32 %v451, %v387
      %v538 = vmul.f32 %v456, %v388
      %v539 = vmul.f32 %v461, %v389
      %v540 = vmul.f32 %v466, %v390
      %v541 = vmul.f32 %v471, %v391
      %v542 = vmul.f32 %v476, %v392
      %v543 = vmul.f32 %v481, %v393
      %v544 = vmul.f32 %v486, %v394
      %v545 = vmul.f32 %v491, %v395
      %v546 = vmul.f32 %v496, %v396
      %v547 = vmul.f32 %v501, %v397
      %v548 = vmul.f32 %v506, %v398
      %v549 = vmul.f32 %v511, %v399
      %v550 = vmul.f32 %v516, %v400
      %v551 = vmul.f32 %v521, %v401
      %v552 = vmul.f32 %v526, %v402
      %v553 = vld [vmem:[%s3] sm:$0xff]
      %v554 = vld [vmem:[%s3 + $0x8] sm:$0xff]
      %v555 = vld [vmem:[%s3 + $0x10] sm:$0xff]
      %v556 = vld [vmem:[%s3 + $0x18] sm:$0xff]
      %v557 = vld [vmem:[%s3 + $0x20] sm:$0xff]
      %v558 = vld [vmem:[%s3 + $0x28] sm:$0xff]
      %v559 = vld [vmem:[%s3 + $0x30] sm:$0xff]
      %v560 = vld [vmem:[%s3 + $0x38] sm:$0xff]
      %v561 = vld [vmem:[%s3 + $0x40] sm:$0xff]
      %v562 = vld [vmem:[%s3 + $0x48] sm:$0xff]
      %v563 = vld [vmem:[%s3 + $0x50] sm:$0xff]
      %v564 = vld [vmem:[%s3 + $0x58] sm:$0xff]
      %v565 = vld [vmem:[%s3 + $0x60] sm:$0xff]
      %v566 = vld [vmem:[%s3 + $0x68] sm:$0xff]
      %v567 = vld [vmem:[%s3 + $0x70] sm:$0xff]
      %v568 = vld [vmem:[%s3 + $0x78] sm:$0xff]
      %v569 = vld [vmem:[%s3 + $0x80] sm:$0xff]
      %v570 = vld [vmem:[%s3 + $0x88] sm:$0xff]
      %v571 = vld [vmem:[%s3 + $0x90] sm:$0xff]
      %v572 = vld [vmem:[%s3 + $0x98] sm:$0xff]
      %v573 = vld [vmem:[%s3 + $0xa0] sm:$0xff]
      %v574 = vld [vmem:[%s3 + $0xa8] sm:$0xff]
      %v575 = vld [vmem:[%s3 + $0xb0] sm:$0xff]
      %v576 = vld [vmem:[%s3 + $0xb8] sm:$0xff]
      %v577 = vld [vmem:[%s3 + $0xc0] sm:$0x3f]
      %v578 = vld [vmem:[%s347] sm:$0xff]
      %v579 = vld [vmem:[%s347 + $0x8] sm:$0xff]
      %v580 = vld [vmem:[%s347 + $0x10] sm:$0xff]
      %v581 = vld [vmem:[%s347 + $0x18] sm:$0xff]
      %v582 = vld [vmem:[%s347 + $0x20] sm:$0xff]
      %v583 = vld [vmem:[%s347 + $0x28] sm:$0xff]
      %v584 = vld [vmem:[%s347 + $0x30] sm:$0xff]
      %v585 = vld [vmem:[%s347 + $0x38] sm:$0xff]
      %v586 = vld [vmem:[%s347 + $0x40] sm:$0xff]
      %v587 = vld [vmem:[%s347 + $0x48] sm:$0xff]
      %v588 = vld [vmem:[%s347 + $0x50] sm:$0xff]
      %v589 = vld [vmem:[%s347 + $0x58] sm:$0xff]
      %v590 = vld [vmem:[%s347 + $0x60] sm:$0xff]
      %v591 = vld [vmem:[%s347 + $0x68] sm:$0xff]
      %v592 = vld [vmem:[%s347 + $0x70] sm:$0xff]
      %v593 = vld [vmem:[%s347 + $0x78] sm:$0xff]
      %v594 = vld [vmem:[%s347 + $0x80] sm:$0xff]
      %v595 = vld [vmem:[%s347 + $0x88] sm:$0xff]
      %v596 = vld [vmem:[%s347 + $0x90] sm:$0xff]
      %v597 = vld [vmem:[%s347 + $0x98] sm:$0xff]
      %v598 = vld [vmem:[%s347 + $0xa0] sm:$0xff]
      %v599 = vld [vmem:[%s347 + $0xa8] sm:$0xff]
      %v600 = vld [vmem:[%s347 + $0xb0] sm:$0xff]
      %v601 = vld [vmem:[%s347 + $0xb8] sm:$0xff]
      %v602 = vld [vmem:[%s347 + $0xc0] sm:$0x3f]
      %604 = vset.pattern.permute.xlu0 0
      %605 = vperm.xlu0 %604, %v553
      %v606 = vpop.permute.xlu0 %605
      %609 = vset.pattern.permute.xlu0 0
      %610 = vperm.xlu0 %609, %v554
      %v611 = vpop.permute.xlu0 %610
      %614 = vset.pattern.permute.xlu0 0
      %615 = vperm.xlu0 %614, %v555
      %v616 = vpop.permute.xlu0 %615
      %619 = vset.pattern.permute.xlu0 0
      %620 = vperm.xlu0 %619, %v556
      %v621 = vpop.permute.xlu0 %620
      %624 = vset.pattern.permute.xlu0 0
      %625 = vperm.xlu0 %624, %v557
      %v626 = vpop.permute.xlu0 %625
      %629 = vset.pattern.permute.xlu0 0
      %630 = vperm.xlu0 %629, %v558
      %v631 = vpop.permute.xlu0 %630
      %634 = vset.pattern.permute.xlu0 0
      %635 = vperm.xlu0 %634, %v559
      %v636 = vpop.permute.xlu0 %635
      %639 = vset.pattern.permute.xlu0 0
      %640 = vperm.xlu0 %639, %v560
      %v641 = vpop.permute.xlu0 %640
      %644 = vset.pattern.permute.xlu0 0
      %645 = vperm.xlu0 %644, %v561
      %v646 = vpop.permute.xlu0 %645
      %649 = vset.pattern.permute.xlu0 0
      %650 = vperm.xlu0 %649, %v562
      %v651 = vpop.permute.xlu0 %650
      %654 = vset.pattern.permute.xlu0 0
      %655 = vperm.xlu0 %654, %v563
      %v656 = vpop.permute.xlu0 %655
      %659 = vset.pattern.permute.xlu0 0
      %660 = vperm.xlu0 %659, %v564
      %v661 = vpop.permute.xlu0 %660
      %664 = vset.pattern.permute.xlu0 0
      %665 = vperm.xlu0 %664, %v565
      %v666 = vpop.permute.xlu0 %665
      %669 = vset.pattern.permute.xlu0 0
      %670 = vperm.xlu0 %669, %v566
      %v671 = vpop.permute.xlu0 %670
      %674 = vset.pattern.permute.xlu0 0
      %675 = vperm.xlu0 %674, %v567
      %v676 = vpop.permute.xlu0 %675
      %679 = vset.pattern.permute.xlu0 0
      %680 = vperm.xlu0 %679, %v568
      %v681 = vpop.permute.xlu0 %680
      %684 = vset.pattern.permute.xlu0 0
      %685 = vperm.xlu0 %684, %v569
      %v686 = vpop.permute.xlu0 %685
      %689 = vset.pattern.permute.xlu0 0
      %690 = vperm.xlu0 %689, %v570
      %v691 = vpop.permute.xlu0 %690
      %694 = vset.pattern.permute.xlu0 0
      %695 = vperm.xlu0 %694, %v571
      %v696 = vpop.permute.xlu0 %695
      %699 = vset.pattern.permute.xlu0 0
      %700 = vperm.xlu0 %699, %v572
      %v701 = vpop.permute.xlu0 %700
      %704 = vset.pattern.permute.xlu0 0
      %705 = vperm.xlu0 %704, %v573
      %v706 = vpop.permute.xlu0 %705
      %709 = vset.pattern.permute.xlu0 0
      %710 = vperm.xlu0 %709, %v574
      %v711 = vpop.permute.xlu0 %710
      %714 = vset.pattern.permute.xlu0 0
      %715 = vperm.xlu0 %714, %v575
      %v716 = vpop.permute.xlu0 %715
      %719 = vset.pattern.permute.xlu0 0
      %720 = vperm.xlu0 %719, %v576
      %v721 = vpop.permute.xlu0 %720
      %724 = vset.pattern.permute.xlu0 0
      %725 = vperm.xlu0 %724, %v577
      %v726 = vpop.permute.xlu0 %725
      %v728 = vmul.f32 %v606, %v578
      %v729 = vmul.f32 %v611, %v579
      %v730 = vmul.f32 %v616, %v580
      %v731 = vmul.f32 %v621, %v581
      %v732 = vmul.f32 %v626, %v582
      %v733 = vmul.f32 %v631, %v583
      %v734 = vmul.f32 %v636, %v584
      %v735 = vmul.f32 %v641, %v585
      %v736 = vmul.f32 %v646, %v586
      %v737 = vmul.f32 %v651, %v587
      %v738 = vmul.f32 %v656, %v588
      %v739 = vmul.f32 %v661, %v589
      %v740 = vmul.f32 %v666, %v590
      %v741 = vmul.f32 %v671, %v591
      %v742 = vmul.f32 %v676, %v592
      %v743 = vmul.f32 %v681, %v593
      %v744 = vmul.f32 %v686, %v594
      %v745 = vmul.f32 %v691, %v595
      %v746 = vmul.f32 %v696, %v596
      %v747 = vmul.f32 %v701, %v597
      %v748 = vmul.f32 %v706, %v598
      %v749 = vmul.f32 %v711, %v599
      %v750 = vmul.f32 %v716, %v600
      %v751 = vmul.f32 %v721, %v601
      %v752 = vmul.f32 %v726, %v602
      %v753 = vadd.f32 %v528, %v728
      %v754 = vadd.f32 %v529, %v729
      %v755 = vadd.f32 %v530, %v730
      %v756 = vadd.f32 %v531, %v731
      %v757 = vadd.f32 %v532, %v732
      %v758 = vadd.f32 %v533, %v733
      %v759 = vadd.f32 %v534, %v734
      %v760 = vadd.f32 %v535, %v735
      %v761 = vadd.f32 %v536, %v736
      %v762 = vadd.f32 %v537, %v737
      %v763 = vadd.f32 %v538, %v738
      %v764 = vadd.f32 %v539, %v739
      %v765 = vadd.f32 %v540, %v740
      %v766 = vadd.f32 %v541, %v741
      %v767 = vadd.f32 %v542, %v742
      %v768 = vadd.f32 %v543, %v743
      %v769 = vadd.f32 %v544, %v744
      %v770 = vadd.f32 %v545, %v745
      %v771 = vadd.f32 %v546, %v746
      %v772 = vadd.f32 %v547, %v747
      %v773 = vadd.f32 %v548, %v748
      %v774 = vadd.f32 %v549, %v749
      %v775 = vadd.f32 %v550, %v750
      %v776 = vadd.f32 %v551, %v751
      %v777 = vadd.f32 %v552, %v752
      %v778 = vpack.c.bf16 %v754, %v753
      %v779 = vpack.c.bf16 %v756, %v755
      %v780 = vpack.c.bf16 %v758, %v757
      %v781 = vpack.c.bf16 %v760, %v759
      %v782 = vpack.c.bf16 %v762, %v761
      %v783 = vpack.c.bf16 %v764, %v763
      %v784 = vpack.c.bf16 %v766, %v765
      %v785 = vpack.c.bf16 %v768, %v767
      %v786 = vpack.c.bf16 %v770, %v769
      %v787 = vpack.c.bf16 %v772, %v771
      %v788 = vpack.c.bf16 %v774, %v773
      %v789 = vpack.c.bf16 %v776, %v775
      %v790 = vpack.c.bf16 %v777, %v777
      %v791 = vld [vmem:[%s5] sm:$0xff]
      %v792 = vld [vmem:[%s5 + $0x8] sm:$0xff]
      %v793 = vld [vmem:[%s5 + $0x10] sm:$0xff]
      %v794 = vld [vmem:[%s5 + $0x18] sm:$0xff]
      %v795 = vld [vmem:[%s5 + $0x20] sm:$0xff]
      %v796 = vld [vmem:[%s5 + $0x28] sm:$0xff]
      %v797 = vld [vmem:[%s5 + $0x30] sm:$0xff]
      %v798 = vld [vmem:[%s5 + $0x38] sm:$0xff]
      %v799 = vld [vmem:[%s5 + $0x40] sm:$0xff]
      %v800 = vld [vmem:[%s5 + $0x48] sm:$0xff]
      %v801 = vld [vmem:[%s5 + $0x50] sm:$0xff]
      %v802 = vld [vmem:[%s5 + $0x58] sm:$0xff]
      %v803 = vld [vmem:[%s5 + $0x60] sm:$0xff]
      %v804 = vld [vmem:[%s5 + $0x68] sm:$0xff]
      %v805 = vld [vmem:[%s5 + $0x70] sm:$0xff]
      %v806 = vld [vmem:[%s5 + $0x78] sm:$0xff]
      %v807 = vld [vmem:[%s5 + $0x80] sm:$0xff]
      %v808 = vld [vmem:[%s5 + $0x88] sm:$0xff]
      %v809 = vld [vmem:[%s5 + $0x90] sm:$0xff]
      %v810 = vld [vmem:[%s5 + $0x98] sm:$0xff]
      %v811 = vld [vmem:[%s5 + $0xa0] sm:$0xff]
      %v812 = vld [vmem:[%s5 + $0xa8] sm:$0xff]
      %v813 = vld [vmem:[%s5 + $0xb0] sm:$0xff]
      %v814 = vld [vmem:[%s5 + $0xb8] sm:$0xff]
      %v815 = vld [vmem:[%s5 + $0xc0] sm:$0xff]
      %v816 = vld [vmem:[%s5 + $0xc8] sm:$0xff]
      %v817 = vld [vmem:[%s5 + $0xd0] sm:$0xff]
      %v818 = vld [vmem:[%s5 + $0xd8] sm:$0xff]
      %v819 = vld [vmem:[%s5 + $0xe0] sm:$0xff]
      %v820 = vld [vmem:[%s5 + $0xe8] sm:$0xff]
      %v821 = vld [vmem:[%s5 + $0xf0] sm:$0xff]
      %v822 = vld [vmem:[%s5 + $0xf8] sm:$0xff]
      %v823 = vld [vmem:[%s5 + $0x100] sm:$0xff]
      %v824 = vld [vmem:[%s5 + $0x108] sm:$0xff]
      %v825 = vld [vmem:[%s5 + $0x110] sm:$0xff]
      %v826 = vld [vmem:[%s5 + $0x118] sm:$0xff]
      %v827 = vld [vmem:[%s5 + $0x120] sm:$0xff]
      %v828 = vld [vmem:[%s5 + $0x128] sm:$0xff]
      %v829 = vld [vmem:[%s5 + $0x130] sm:$0xff]
      %v830 = vld [vmem:[%s5 + $0x138] sm:$0xff]
      %v831 = vld [vmem:[%s5 + $0x140] sm:$0xff]
      %v832 = vld [vmem:[%s5 + $0x148] sm:$0xff]
      %v833 = vld [vmem:[%s5 + $0x150] sm:$0xff]
      %v834 = vld [vmem:[%s5 + $0x158] sm:$0xff]
      %v835 = vld [vmem:[%s5 + $0x160] sm:$0xff]
      %v836 = vld [vmem:[%s5 + $0x168] sm:$0xff]
      %v837 = vld [vmem:[%s5 + $0x170] sm:$0xff]
      %v838 = vld [vmem:[%s5 + $0x178] sm:$0xff]
      %v839 = vld [vmem:[%s5 + $0x180] sm:$0xff]
      %v840 = vld [vmem:[%s5 + $0x188] sm:$0xff]
      %v841 = vld [vmem:[%s5 + $0x190] sm:$0xff]
      %v842 = vld [vmem:[%s5 + $0x198] sm:$0xff]
      %v843 = vld [vmem:[%s5 + $0x1a0] sm:$0xff]
      %v844 = vld [vmem:[%s5 + $0x1a8] sm:$0xff]
      %v845 = vld [vmem:[%s5 + $0x1b0] sm:$0xff]
      %v846 = vld [vmem:[%s5 + $0x1b8] sm:$0xff]
      %v847 = vld [vmem:[%s5 + $0x1c0] sm:$0xff]
      %v848 = vld [vmem:[%s5 + $0x1c8] sm:$0xff]
      %v849 = vld [vmem:[%s5 + $0x1d0] sm:$0xff]
      %v850 = vld [vmem:[%s5 + $0x1d8] sm:$0xff]
      %v851 = vld [vmem:[%s5 + $0x1e0] sm:$0xff]
      %v852 = vld [vmem:[%s5 + $0x1e8] sm:$0xff]
      %v853 = vld [vmem:[%s5 + $0x1f0] sm:$0xff]
      %v854 = vld [vmem:[%s5 + $0x1f8] sm:$0xff]
      %v855 = vld [vmem:[%s4] sm:$0xff]
      %v856 = vld [vmem:[%s4 + $0x8] sm:$0xff]
      %v857 = vld [vmem:[%s4 + $0x10] sm:$0xff]
      %v858 = vld [vmem:[%s4 + $0x18] sm:$0xff]
      %v859 = vld [vmem:[%s4 + $0x20] sm:$0xff]
      %v860 = vld [vmem:[%s4 + $0x28] sm:$0xff]
      %v861 = vld [vmem:[%s4 + $0x30] sm:$0xff]
      %v862 = vld [vmem:[%s4 + $0x38] sm:$0xff]
      %v863 = vld [vmem:[%s4 + $0x40] sm:$0xff]
      %v864 = vld [vmem:[%s4 + $0x48] sm:$0xff]
      %v865 = vld [vmem:[%s4 + $0x50] sm:$0xff]
      %v866 = vld [vmem:[%s4 + $0x58] sm:$0xff]
      %v867 = vld [vmem:[%s4 + $0x60] sm:$0xff]
      %v868 = vld [vmem:[%s4 + $0x68] sm:$0xff]
      %v869 = vld [vmem:[%s4 + $0x70] sm:$0xff]
      %v870 = vld [vmem:[%s4 + $0x78] sm:$0xff]
      %v871 = vld [vmem:[%s4 + $0x80] sm:$0xff]
      %v872 = vld [vmem:[%s4 + $0x88] sm:$0xff]
      %v873 = vld [vmem:[%s4 + $0x90] sm:$0xff]
      %v874 = vld [vmem:[%s4 + $0x98] sm:$0xff]
      %v875 = vld [vmem:[%s4 + $0xa0] sm:$0xff]
      %v876 = vld [vmem:[%s4 + $0xa8] sm:$0xff]
      %v877 = vld [vmem:[%s4 + $0xb0] sm:$0xff]
      %v878 = vld [vmem:[%s4 + $0xb8] sm:$0xff]
      %v879 = vld [vmem:[%s4 + $0xc0] sm:$0x3f]
      %v880 = vld [vmem:[%s6] sm:$0xff]
      %882 = vset.pattern.permute.xlu0 0
      %883 = vperm.xlu0 %882, %v855
      %v884 = vpop.permute.xlu0 %883
      %887 = vset.pattern.permute.xlu0 0
      %888 = vperm.xlu0 %887, %v856
      %v889 = vpop.permute.xlu0 %888
      %892 = vset.pattern.permute.xlu0 0
      %893 = vperm.xlu0 %892, %v857
      %v894 = vpop.permute.xlu0 %893
      %897 = vset.pattern.permute.xlu0 0
      %898 = vperm.xlu0 %897, %v858
      %v899 = vpop.permute.xlu0 %898
      %902 = vset.pattern.permute.xlu0 0
      %903 = vperm.xlu0 %902, %v859
      %v904 = vpop.permute.xlu0 %903
      %907 = vset.pattern.permute.xlu0 0
      %908 = vperm.xlu0 %907, %v860
      %v909 = vpop.permute.xlu0 %908
      %912 = vset.pattern.permute.xlu0 0
      %913 = vperm.xlu0 %912, %v861
      %v914 = vpop.permute.xlu0 %913
      %917 = vset.pattern.permute.xlu0 0
      %918 = vperm.xlu0 %917, %v862
      %v919 = vpop.permute.xlu0 %918
      %922 = vset.pattern.permute.xlu0 0
      %923 = vperm.xlu0 %922, %v863
      %v924 = vpop.permute.xlu0 %923
      %927 = vset.pattern.permute.xlu0 0
      %928 = vperm.xlu0 %927, %v864
      %v929 = vpop.permute.xlu0 %928
      %932 = vset.pattern.permute.xlu0 0
      %933 = vperm.xlu0 %932, %v865
      %v934 = vpop.permute.xlu0 %933
      %937 = vset.pattern.permute.xlu0 0
      %938 = vperm.xlu0 %937, %v866
      %v939 = vpop.permute.xlu0 %938
      %942 = vset.pattern.permute.xlu0 0
      %943 = vperm.xlu0 %942, %v867
      %v944 = vpop.permute.xlu0 %943
      %947 = vset.pattern.permute.xlu0 0
      %948 = vperm.xlu0 %947, %v868
      %v949 = vpop.permute.xlu0 %948
      %952 = vset.pattern.permute.xlu0 0
      %953 = vperm.xlu0 %952, %v869
      %v954 = vpop.permute.xlu0 %953
      %957 = vset.pattern.permute.xlu0 0
      %958 = vperm.xlu0 %957, %v870
      %v959 = vpop.permute.xlu0 %958
      %962 = vset.pattern.permute.xlu0 0
      %963 = vperm.xlu0 %962, %v871
      %v964 = vpop.permute.xlu0 %963
      %967 = vset.pattern.permute.xlu0 0
      %968 = vperm.xlu0 %967, %v872
      %v969 = vpop.permute.xlu0 %968
      %972 = vset.pattern.permute.xlu0 0
      %973 = vperm.xlu0 %972, %v873
      %v974 = vpop.permute.xlu0 %973
      %977 = vset.pattern.permute.xlu0 0
      %978 = vperm.xlu0 %977, %v874
      %v979 = vpop.permute.xlu0 %978
      %982 = vset.pattern.permute.xlu0 0
      %983 = vperm.xlu0 %982, %v875
      %v984 = vpop.permute.xlu0 %983
      %987 = vset.pattern.permute.xlu0 0
      %988 = vperm.xlu0 %987, %v876
      %v989 = vpop.permute.xlu0 %988
      %992 = vset.pattern.permute.xlu0 0
      %993 = vperm.xlu0 %992, %v877
      %v994 = vpop.permute.xlu0 %993
      %997 = vset.pattern.permute.xlu0 0
      %998 = vperm.xlu0 %997, %v878
      %v999 = vpop.permute.xlu0 %998
      %1002 = vset.pattern.permute.xlu0 0
      %1003 = vperm.xlu0 %1002, %v879
      %v1004 = vpop.permute.xlu0 %1003
      %v1007 = vperm.slane %v880, 0
      %v1008 = vperm.slane %v880, 1
      %v1009 = vperm.slane %v880, 2
      %v1010 = vperm.slane %v880, 3
      %v1011 = vperm.slane %v880, 4
      %v1012 = vperm.slane %v880, 5
      %v1013 = vperm.slane %v880, 6
      %v1014 = vperm.slane %v880, 7
      %v1023 = vmul.f32 %v884, %v1007
      %v1024 = vmul.f32 %v884, %v1008
      %v1025 = vmul.f32 %v884, %v1009
      %v1026 = vmul.f32 %v884, %v1010
      %v1027 = vmul.f32 %v884, %v1011
      %v1028 = vmul.f32 %v884, %v1012
      %v1029 = vmul.f32 %v884, %v1013
      %v1030 = vmul.f32 %v884, %v1014
      %v1031 = vmul.f32 %v889, %v1007
      %v1032 = vmul.f32 %v889, %v1008
      %v1033 = vmul.f32 %v889, %v1009
      %v1034 = vmul.f32 %v889, %v1010
      %v1035 = vmul.f32 %v889, %v1011
      %v1036 = vmul.f32 %v889, %v1012
      %v1037 = vmul.f32 %v889, %v1013
      %v1038 = vmul.f32 %v889, %v1014
      %v1039 = vmul.f32 %v894, %v1007
      %v1040 = vmul.f32 %v894, %v1008
      %v1041 = vmul.f32 %v894, %v1009
      %v1042 = vmul.f32 %v894, %v1010
      %v1043 = vmul.f32 %v894, %v1011
      %v1044 = vmul.f32 %v894, %v1012
      %v1045 = vmul.f32 %v894, %v1013
      %v1046 = vmul.f32 %v894, %v1014
      %v1047 = vmul.f32 %v899, %v1007
      %v1048 = vmul.f32 %v899, %v1008
      %v1049 = vmul.f32 %v899, %v1009
      %v1050 = vmul.f32 %v899, %v1010
      %v1051 = vmul.f32 %v899, %v1011
      %v1052 = vmul.f32 %v899, %v1012
      %v1053 = vmul.f32 %v899, %v1013
      %v1054 = vmul.f32 %v899, %v1014
      %v1055 = vmul.f32 %v904, %v1007
      %v1056 = vmul.f32 %v904, %v1008
      %v1057 = vmul.f32 %v904, %v1009
      %v1058 = vmul.f32 %v904, %v1010
      %v1059 = vmul.f32 %v904, %v1011
      %v1060 = vmul.f32 %v904, %v1012
      %v1061 = vmul.f32 %v904, %v1013
      %v1062 = vmul.f32 %v904, %v1014
      %v1063 = vmul.f32 %v909, %v1007
      %v1064 = vmul.f32 %v909, %v1008
      %v1065 = vmul.f32 %v909, %v1009
      %v1066 = vmul.f32 %v909, %v1010
      %v1067 = vmul.f32 %v909, %v1011
      %v1068 = vmul.f32 %v909, %v1012
      %v1069 = vmul.f32 %v909, %v1013
      %v1070 = vmul.f32 %v909, %v1014
      %v1071 = vmul.f32 %v914, %v1007
      %v1072 = vmul.f32 %v914, %v1008
      %v1073 = vmul.f32 %v914, %v1009
      %v1074 = vmul.f32 %v914, %v1010
      %v1075 = vmul.f32 %v914, %v1011
      %v1076 = vmul.f32 %v914, %v1012
      %v1077 = vmul.f32 %v914, %v1013
      %v1078 = vmul.f32 %v914, %v1014
      %v1079 = vmul.f32 %v919, %v1007
      %v1080 = vmul.f32 %v919, %v1008
      %v1081 = vmul.f32 %v919, %v1009
      %v1082 = vmul.f32 %v919, %v1010
      %v1083 = vmul.f32 %v919, %v1011
      %v1084 = vmul.f32 %v919, %v1012
      %v1085 = vmul.f32 %v919, %v1013
      %v1086 = vmul.f32 %v919, %v1014
      %v1087 = vmul.f32 %v924, %v1007
      %v1088 = vmul.f32 %v924, %v1008
      %v1089 = vmul.f32 %v924, %v1009
      %v1090 = vmul.f32 %v924, %v1010
      %v1091 = vmul.f32 %v924, %v1011
      %v1092 = vmul.f32 %v924, %v1012
      %v1093 = vmul.f32 %v924, %v1013
      %v1094 = vmul.f32 %v924, %v1014
      %v1095 = vmul.f32 %v929, %v1007
      %v1096 = vmul.f32 %v929, %v1008
      %v1097 = vmul.f32 %v929, %v1009
      %v1098 = vmul.f32 %v929, %v1010
      %v1099 = vmul.f32 %v929, %v1011
      %v1100 = vmul.f32 %v929, %v1012
      %v1101 = vmul.f32 %v929, %v1013
      %v1102 = vmul.f32 %v929, %v1014
      %v1103 = vmul.f32 %v934, %v1007
      %v1104 = vmul.f32 %v934, %v1008
      %v1105 = vmul.f32 %v934, %v1009
      %v1106 = vmul.f32 %v934, %v1010
      %v1107 = vmul.f32 %v934, %v1011
      %v1108 = vmul.f32 %v934, %v1012
      %v1109 = vmul.f32 %v934, %v1013
      %v1110 = vmul.f32 %v934, %v1014
      %v1111 = vmul.f32 %v939, %v1007
      %v1112 = vmul.f32 %v939, %v1008
      %v1113 = vmul.f32 %v939, %v1009
      %v1114 = vmul.f32 %v939, %v1010
      %v1115 = vmul.f32 %v939, %v1011
      %v1116 = vmul.f32 %v939, %v1012
      %v1117 = vmul.f32 %v939, %v1013
      %v1118 = vmul.f32 %v939, %v1014
      %v1119 = vmul.f32 %v944, %v1007
      %v1120 = vmul.f32 %v944, %v1008
      %v1121 = vmul.f32 %v944, %v1009
      %v1122 = vmul.f32 %v944, %v1010
      %v1123 = vmul.f32 %v944, %v1011
      %v1124 = vmul.f32 %v944, %v1012
      %v1125 = vmul.f32 %v944, %v1013
      %v1126 = vmul.f32 %v944, %v1014
      %v1127 = vmul.f32 %v949, %v1007
      %v1128 = vmul.f32 %v949, %v1008
      %v1129 = vmul.f32 %v949, %v1009
      %v1130 = vmul.f32 %v949, %v1010
      %v1131 = vmul.f32 %v949, %v1011
      %v1132 = vmul.f32 %v949, %v1012
      %v1133 = vmul.f32 %v949, %v1013
      %v1134 = vmul.f32 %v949, %v1014
      %v1135 = vmul.f32 %v954, %v1007
      %v1136 = vmul.f32 %v954, %v1008
      %v1137 = vmul.f32 %v954, %v1009
      %v1138 = vmul.f32 %v954, %v1010
      %v1139 = vmul.f32 %v954, %v1011
      %v1140 = vmul.f32 %v954, %v1012
      %v1141 = vmul.f32 %v954, %v1013
      %v1142 = vmul.f32 %v954, %v1014
      %v1143 = vmul.f32 %v959, %v1007
      %v1144 = vmul.f32 %v959, %v1008
      %v1145 = vmul.f32 %v959, %v1009
      %v1146 = vmul.f32 %v959, %v1010
      %v1147 = vmul.f32 %v959, %v1011
      %v1148 = vmul.f32 %v959, %v1012
      %v1149 = vmul.f32 %v959, %v1013
      %v1150 = vmul.f32 %v959, %v1014
      %v1151 = vmul.f32 %v964, %v1007
      %v1152 = vmul.f32 %v964, %v1008
      %v1153 = vmul.f32 %v964, %v1009
      %v1154 = vmul.f32 %v964, %v1010
      %v1155 = vmul.f32 %v964, %v1011
      %v1156 = vmul.f32 %v964, %v1012
      %v1157 = vmul.f32 %v964, %v1013
      %v1158 = vmul.f32 %v964, %v1014
      %v1159 = vmul.f32 %v969, %v1007
      %v1160 = vmul.f32 %v969, %v1008
      %v1161 = vmul.f32 %v969, %v1009
      %v1162 = vmul.f32 %v969, %v1010
      %v1163 = vmul.f32 %v969, %v1011
      %v1164 = vmul.f32 %v969, %v1012
      %v1165 = vmul.f32 %v969, %v1013
      %v1166 = vmul.f32 %v969, %v1014
      %v1167 = vmul.f32 %v974, %v1007
      %v1168 = vmul.f32 %v974, %v1008
      %v1169 = vmul.f32 %v974, %v1009
      %v1170 = vmul.f32 %v974, %v1010
      %v1171 = vmul.f32 %v974, %v1011
      %v1172 = vmul.f32 %v974, %v1012
      %v1173 = vmul.f32 %v974, %v1013
      %v1174 = vmul.f32 %v974, %v1014
      %v1175 = vmul.f32 %v979, %v1007
      %v1176 = vmul.f32 %v979, %v1008
      %v1177 = vmul.f32 %v979, %v1009
      %v1178 = vmul.f32 %v979, %v1010
      %v1179 = vmul.f32 %v979, %v1011
      %v1180 = vmul.f32 %v979, %v1012
      %v1181 = vmul.f32 %v979, %v1013
      %v1182 = vmul.f32 %v979, %v1014
      %v1183 = vmul.f32 %v984, %v1007
      %v1184 = vmul.f32 %v984, %v1008
      %v1185 = vmul.f32 %v984, %v1009
      %v1186 = vmul.f32 %v984, %v1010
      %v1187 = vmul.f32 %v984, %v1011
      %v1188 = vmul.f32 %v984, %v1012
      %v1189 = vmul.f32 %v984, %v1013
      %v1190 = vmul.f32 %v984, %v1014
      %v1191 = vmul.f32 %v989, %v1007
      %v1192 = vmul.f32 %v989, %v1008
      %v1193 = vmul.f32 %v989, %v1009
      %v1194 = vmul.f32 %v989, %v1010
      %v1195 = vmul.f32 %v989, %v1011
      %v1196 = vmul.f32 %v989, %v1012
      %v1197 = vmul.f32 %v989, %v1013
      %v1198 = vmul.f32 %v989, %v1014
      %v1199 = vmul.f32 %v994, %v1007
      %v1200 = vmul.f32 %v994, %v1008
      %v1201 = vmul.f32 %v994, %v1009
      %v1202 = vmul.f32 %v994, %v1010
      %v1203 = vmul.f32 %v994, %v1011
      %v1204 = vmul.f32 %v994, %v1012
      %v1205 = vmul.f32 %v994, %v1013
      %v1206 = vmul.f32 %v994, %v1014
      %v1207 = vmul.f32 %v999, %v1007
      %v1208 = vmul.f32 %v999, %v1008
      %v1209 = vmul.f32 %v999, %v1009
      %v1210 = vmul.f32 %v999, %v1010
      %v1211 = vmul.f32 %v999, %v1011
      %v1212 = vmul.f32 %v999, %v1012
      %v1213 = vmul.f32 %v999, %v1013
      %v1214 = vmul.f32 %v999, %v1014
      %v1215 = vmul.f32 %v1004, %v1007
      %v1216 = vmul.f32 %v1004, %v1008
      %v1217 = vmul.f32 %v1004, %v1009
      %v1218 = vmul.f32 %v1004, %v1010
      %v1219 = vmul.f32 %v1004, %v1011
      %v1220 = vmul.f32 %v1004, %v1012
      %v1221 = vmul.f32 %v1004, %v1013
      %v1222 = vmul.f32 %v1004, %v1014
      %v1287 = vunpack.c.l.b16 %v791
      %v1288 = vunpack.c.h.b16 %v791
      %v1289 = vunpack.c.l.b16 %v792
      %v1290 = vunpack.c.h.b16 %v792
      %v1291 = vunpack.c.l.b16 %v793
      %v1292 = vunpack.c.h.b16 %v793
      %v1293 = vunpack.c.l.b16 %v794
      %v1294 = vunpack.c.h.b16 %v794
      %v1295 = vunpack.c.l.b16 %v795
      %v1296 = vunpack.c.h.b16 %v795
      %v1297 = vunpack.c.l.b16 %v796
      %v1298 = vunpack.c.h.b16 %v796
      %v1299 = vunpack.c.l.b16 %v797
      %v1300 = vunpack.c.h.b16 %v797
      %v1301 = vunpack.c.l.b16 %v798
      %v1302 = vunpack.c.h.b16 %v798
      %v1303 = vunpack.c.l.b16 %v799
      %v1304 = vunpack.c.h.b16 %v799
      %v1305 = vunpack.c.l.b16 %v800
      %v1306 = vunpack.c.h.b16 %v800
      %v1307 = vunpack.c.l.b16 %v801
      %v1308 = vunpack.c.h.b16 %v801
      %v1309 = vunpack.c.l.b16 %v802
      %v1310 = vunpack.c.h.b16 %v802
      %v1311 = vunpack.c.l.b16 %v803
      %v1312 = vunpack.c.h.b16 %v803
      %v1313 = vunpack.c.l.b16 %v804
      %v1314 = vunpack.c.h.b16 %v804
      %v1315 = vunpack.c.l.b16 %v805
      %v1316 = vunpack.c.h.b16 %v805
      %v1317 = vunpack.c.l.b16 %v806
      %v1318 = vunpack.c.h.b16 %v806
      %v1319 = vunpack.c.l.b16 %v807
      %v1320 = vunpack.c.h.b16 %v807
      %v1321 = vunpack.c.l.b16 %v808
      %v1322 = vunpack.c.h.b16 %v808
      %v1323 = vunpack.c.l.b16 %v809
      %v1324 = vunpack.c.h.b16 %v809
      %v1325 = vunpack.c.l.b16 %v810
      %v1326 = vunpack.c.h.b16 %v810
      %v1327 = vunpack.c.l.b16 %v811
      %v1328 = vunpack.c.h.b16 %v811
      %v1329 = vunpack.c.l.b16 %v812
      %v1330 = vunpack.c.h.b16 %v812
      %v1331 = vunpack.c.l.b16 %v813
      %v1332 = vunpack.c.h.b16 %v813
      %v1333 = vunpack.c.l.b16 %v814
      %v1334 = vunpack.c.h.b16 %v814
      %v1335 = vunpack.c.l.b16 %v815
      %v1336 = vunpack.c.h.b16 %v815
      %v1337 = vunpack.c.l.b16 %v816
      %v1338 = vunpack.c.h.b16 %v816
      %v1339 = vunpack.c.l.b16 %v817
      %v1340 = vunpack.c.h.b16 %v817
      %v1341 = vunpack.c.l.b16 %v818
      %v1342 = vunpack.c.h.b16 %v818
      %v1343 = vunpack.c.l.b16 %v819
      %v1344 = vunpack.c.h.b16 %v819
      %v1345 = vunpack.c.l.b16 %v820
      %v1346 = vunpack.c.h.b16 %v820
      %v1347 = vunpack.c.l.b16 %v821
      %v1348 = vunpack.c.h.b16 %v821
      %v1349 = vunpack.c.l.b16 %v822
      %v1350 = vunpack.c.h.b16 %v822
      %v1351 = vunpack.c.l.b16 %v823
      %v1352 = vunpack.c.h.b16 %v823
      %v1353 = vunpack.c.l.b16 %v824
      %v1354 = vunpack.c.h.b16 %v824
      %v1355 = vunpack.c.l.b16 %v825
      %v1356 = vunpack.c.h.b16 %v825
      %v1357 = vunpack.c.l.b16 %v826
      %v1358 = vunpack.c.h.b16 %v826
      %v1359 = vunpack.c.l.b16 %v827
      %v1360 = vunpack.c.h.b16 %v827
      %v1361 = vunpack.c.l.b16 %v828
      %v1362 = vunpack.c.h.b16 %v828
      %v1363 = vunpack.c.l.b16 %v829
      %v1364 = vunpack.c.h.b16 %v829
      %v1365 = vunpack.c.l.b16 %v830
      %v1366 = vunpack.c.h.b16 %v830
      %v1367 = vunpack.c.l.b16 %v831
      %v1368 = vunpack.c.h.b16 %v831
      %v1369 = vunpack.c.l.b16 %v832
      %v1370 = vunpack.c.h.b16 %v832
      %v1371 = vunpack.c.l.b16 %v833
      %v1372 = vunpack.c.h.b16 %v833
      %v1373 = vunpack.c.l.b16 %v834
      %v1374 = vunpack.c.h.b16 %v834
      %v1375 = vunpack.c.l.b16 %v835
      %v1376 = vunpack.c.h.b16 %v835
      %v1377 = vunpack.c.l.b16 %v836
      %v1378 = vunpack.c.h.b16 %v836
      %v1379 = vunpack.c.l.b16 %v837
      %v1380 = vunpack.c.h.b16 %v837
      %v1381 = vunpack.c.l.b16 %v838
      %v1382 = vunpack.c.h.b16 %v838
      %v1383 = vunpack.c.l.b16 %v839
      %v1384 = vunpack.c.h.b16 %v839
      %v1385 = vunpack.c.l.b16 %v840
      %v1386 = vunpack.c.h.b16 %v840
      %v1387 = vunpack.c.l.b16 %v841
      %v1388 = vunpack.c.h.b16 %v841
      %v1389 = vunpack.c.l.b16 %v842
      %v1390 = vunpack.c.h.b16 %v842
      %v1391 = vunpack.c.l.b16 %v843
      %v1392 = vunpack.c.h.b16 %v843
      %v1393 = vunpack.c.l.b16 %v844
      %v1394 = vunpack.c.h.b16 %v844
      %v1395 = vunpack.c.l.b16 %v845
      %v1396 = vunpack.c.h.b16 %v845
      %v1397 = vunpack.c.l.b16 %v846
      %v1398 = vunpack.c.h.b16 %v846
      %v1399 = vunpack.c.l.b16 %v847
      %v1400 = vunpack.c.h.b16 %v847
      %v1401 = vunpack.c.l.b16 %v848
      %v1402 = vunpack.c.h.b16 %v848
      %v1403 = vunpack.c.l.b16 %v849
      %v1404 = vunpack.c.h.b16 %v849
      %v1405 = vunpack.c.l.b16 %v850
      %v1406 = vunpack.c.h.b16 %v850
      %v1407 = vunpack.c.l.b16 %v851
      %v1408 = vunpack.c.h.b16 %v851
      %v1409 = vunpack.c.l.b16 %v852
      %v1410 = vunpack.c.h.b16 %v852
      %v1411 = vunpack.c.l.b16 %v853
      %v1412 = vunpack.c.h.b16 %v853
      %v1413 = vunpack.c.l.b16 %v854
      %v1414 = vunpack.c.h.b16 %v854
      %v1415 = vpack.c.b16 %v1295, %v1287
      %v1416 = vpack.c.b16 %v1296, %v1288
      %v1417 = vpack.c.b16 %v1297, %v1289
      %v1418 = vpack.c.b16 %v1298, %v1290
      %v1419 = vpack.c.b16 %v1299, %v1291
      %v1420 = vpack.c.b16 %v1300, %v1292
      %v1421 = vpack.c.b16 %v1301, %v1293
      %v1422 = vpack.c.b16 %v1302, %v1294
      %v1423 = vpack.c.b16 %v1311, %v1303
      %v1424 = vpack.c.b16 %v1312, %v1304
      %v1425 = vpack.c.b16 %v1313, %v1305
      %v1426 = vpack.c.b16 %v1314, %v1306
      %v1427 = vpack.c.b16 %v1315, %v1307
      %v1428 = vpack.c.b16 %v1316, %v1308
      %v1429 = vpack.c.b16 %v1317, %v1309
      %v1430 = vpack.c.b16 %v1318, %v1310
      %v1431 = vpack.c.b16 %v1327, %v1319
      %v1432 = vpack.c.b16 %v1328, %v1320
      %v1433 = vpack.c.b16 %v1329, %v1321
      %v1434 = vpack.c.b16 %v1330, %v1322
      %v1435 = vpack.c.b16 %v1331, %v1323
      %v1436 = vpack.c.b16 %v1332, %v1324
      %v1437 = vpack.c.b16 %v1333, %v1325
      %v1438 = vpack.c.b16 %v1334, %v1326
      %v1439 = vpack.c.b16 %v1343, %v1335
      %v1440 = vpack.c.b16 %v1344, %v1336
      %v1441 = vpack.c.b16 %v1345, %v1337
      %v1442 = vpack.c.b16 %v1346, %v1338
      %v1443 = vpack.c.b16 %v1347, %v1339
      %v1444 = vpack.c.b16 %v1348, %v1340
      %v1445 = vpack.c.b16 %v1349, %v1341
      %v1446 = vpack.c.b16 %v1350, %v1342
      %v1447 = vpack.c.b16 %v1359, %v1351
      %v1448 = vpack.c.b16 %v1360, %v1352
      %v1449 = vpack.c.b16 %v1361, %v1353
      %v1450 = vpack.c.b16 %v1362, %v1354
      %v1451 = vpack.c.b16 %v1363, %v1355
      %v1452 = vpack.c.b16 %v1364, %v1356
      %v1453 = vpack.c.b16 %v1365, %v1357
      %v1454 = vpack.c.b16 %v1366, %v1358
      %v1455 = vpack.c.b16 %v1375, %v1367
      %v1456 = vpack.c.b16 %v1376, %v1368
      %v1457 = vpack.c.b16 %v1377, %v1369
      %v1458 = vpack.c.b16 %v1378, %v1370
      %v1459 = vpack.c.b16 %v1379, %v1371
      %v1460 = vpack.c.b16 %v1380, %v1372
      %v1461 = vpack.c.b16 %v1381, %v1373
      %v1462 = vpack.c.b16 %v1382, %v1374
      %v1463 = vpack.c.b16 %v1391, %v1383
      %v1464 = vpack.c.b16 %v1392, %v1384
      %v1465 = vpack.c.b16 %v1393, %v1385
      %v1466 = vpack.c.b16 %v1394, %v1386
      %v1467 = vpack.c.b16 %v1395, %v1387
      %v1468 = vpack.c.b16 %v1396, %v1388
      %v1469 = vpack.c.b16 %v1397, %v1389
      %v1470 = vpack.c.b16 %v1398, %v1390
      %v1471 = vpack.c.b16 %v1407, %v1399
      %v1472 = vpack.c.b16 %v1408, %v1400
      %v1473 = vpack.c.b16 %v1409, %v1401
      %v1474 = vpack.c.b16 %v1410, %v1402
      %v1475 = vpack.c.b16 %v1411, %v1403
      %v1476 = vpack.c.b16 %v1412, %v1404
      %v1477 = vpack.c.b16 %v1413, %v1405
      %v1478 = vpack.c.b16 %v1414, %v1406
      %1543 = vmatpush.bf16.msra.mxu0 %v1471
      %1544 = vmatpush.bf16.msra.mxu0 %v1463
      %1545 = vmatpush.bf16.msra.mxu0 %v1455
      %1546 = vmatpush.bf16.msra.mxu0 %v1447
      %1547 = vmatpush.bf16.msra.mxu0 %v1439
      %1548 = vmatpush.bf16.msra.mxu0 %v1431
      %1549 = vmatpush.bf16.msra.mxu0 %v1423
      %1550 = vmatpush.bf16.msra.mxu0 %v1415
      %1551 = vmatmul.bf16.gmra.mxu0 %v778
      %v1552 = vpop.f32.mrf.mxu0
      %v1553 = vadd.f32 %v1023, %v1552
      %v1554 = vpop.f32.mrf.mxu0
      %v1555 = vadd.f32 %v1031, %v1554
      %1556 = vmatmul.bf16.gmra.mxu0 %v779
      %v1557 = vpop.f32.mrf.mxu0
      %v1558 = vadd.f32 %v1039, %v1557
      %v1559 = vpop.f32.mrf.mxu0
      %v1560 = vadd.f32 %v1047, %v1559
      %1561 = vmatmul.bf16.gmra.mxu0 %v780
      %v1562 = vpop.f32.mrf.mxu0
      %v1563 = vadd.f32 %v1055, %v1562
      %v1564 = vpop.f32.mrf.mxu0
      %v1565 = vadd.f32 %v1063, %v1564
      %1566 = vmatmul.bf16.gmra.mxu0 %v781
      %v1567 = vpop.f32.mrf.mxu0
      %v1568 = vadd.f32 %v1071, %v1567
      %v1569 = vpop.f32.mrf.mxu0
      %v1570 = vadd.f32 %v1079, %v1569
      %1571 = vmatmul.bf16.gmra.mxu0 %v782
      %v1572 = vpop.f32.mrf.mxu0
      %v1573 = vadd.f32 %v1087, %v1572
      %v1574 = vpop.f32.mrf.mxu0
      %v1575 = vadd.f32 %v1095, %v1574
      %1576 = vmatmul.bf16.gmra.mxu0 %v783
      %v1577 = vpop.f32.mrf.mxu0
      %v1578 = vadd.f32 %v1103, %v1577
      %v1579 = vpop.f32.mrf.mxu0
      %v1580 = vadd.f32 %v1111, %v1579
      %1581 = vmatmul.bf16.gmra.mxu0 %v784
      %v1582 = vpop.f32.mrf.mxu0
      %v1583 = vadd.f32 %v1119, %v1582
      %v1584 = vpop.f32.mrf.mxu0
      %v1585 = vadd.f32 %v1127, %v1584
      %1586 = vmatmul.bf16.gmra.mxu0 %v785
      %v1587 = vpop.f32.mrf.mxu0
      %v1588 = vadd.f32 %v1135, %v1587
      %v1589 = vpop.f32.mrf.mxu0
      %v1590 = vadd.f32 %v1143, %v1589
      %1591 = vmatmul.bf16.gmra.mxu0 %v786
      %v1592 = vpop.f32.mrf.mxu0
      %v1593 = vadd.f32 %v1151, %v1592
      %v1594 = vpop.f32.mrf.mxu0
      %v1595 = vadd.f32 %v1159, %v1594
      %1596 = vmatmul.bf16.gmra.mxu0 %v787
      %v1597 = vpop.f32.mrf.mxu0
      %v1598 = vadd.f32 %v1167, %v1597
      %v1599 = vpop.f32.mrf.mxu0
      %v1600 = vadd.f32 %v1175, %v1599
      %1601 = vmatmul.bf16.gmra.mxu0 %v788
      %v1602 = vpop.f32.mrf.mxu0
      %v1603 = vadd.f32 %v1183, %v1602
      %v1604 = vpop.f32.mrf.mxu0
      %v1605 = vadd.f32 %v1191, %v1604
      %1606 = vmatmul.bf16.gmra.mxu0 %v789
      %v1607 = vpop.f32.mrf.mxu0
      %v1608 = vadd.f32 %v1199, %v1607
      %v1609 = vpop.f32.mrf.mxu0
      %v1610 = vadd.f32 %v1207, %v1609
      %1611 = vmatmul.bf16.gmra.mxu0 %v790
      %v1612 = vpop.f32.mrf.mxu0
      %v1613 = vadd.f32 %v1215, %v1612
      %v1614 = vpop.f32.mrf.mxu0
      %1615 = vdwg.mxu0
      %1616 = vmatpush.bf16.msra.mxu0 %v1472
      %1617 = vmatpush.bf16.msra.mxu0 %v1464
      %1618 = vmatpush.bf16.msra.mxu0 %v1456
      %1619 = vmatpush.bf16.msra.mxu0 %v1448
      %1620 = vmatpush.bf16.msra.mxu0 %v1440
      %1621 = vmatpush.bf16.msra.mxu0 %v1432
      %1622 = vmatpush.bf16.msra.mxu0 %v1424
      %1623 = vmatpush.bf16.msra.mxu0 %v1416
      %1624 = vmatmul.bf16.gmra.mxu0 %v778
      %v1625 = vpop.f32.mrf.mxu0
      %v1626 = vadd.f32 %v1024, %v1625
      %v1627 = vpop.f32.mrf.mxu0
      %v1628 = vadd.f32 %v1032, %v1627
      %1629 = vmatmul.bf16.gmra.mxu0 %v779
      %v1630 = vpop.f32.mrf.mxu0
      %v1631 = vadd.f32 %v1040, %v1630
      %v1632 = vpop.f32.mrf.mxu0
      %v1633 = vadd.f32 %v1048, %v1632
      %1634 = vmatmul.bf16.gmra.mxu0 %v780
      %v1635 = vpop.f32.mrf.mxu0
      %v1636 = vadd.f32 %v1056, %v1635
      %v1637 = vpop.f32.mrf.mxu0
      %v1638 = vadd.f32 %v1064, %v1637
      %1639 = vmatmul.bf16.gmra.mxu0 %v781
      %v1640 = vpop.f32.mrf.mxu0
      %v1641 = vadd.f32 %v1072, %v1640
      %v1642 = vpop.f32.mrf.mxu0
      %v1643 = vadd.f32 %v1080, %v1642
      %1644 = vmatmul.bf16.gmra.mxu0 %v782
      %v1645 = vpop.f32.mrf.mxu0
      %v1646 = vadd.f32 %v1088, %v1645
      %v1647 = vpop.f32.mrf.mxu0
      %v1648 = vadd.f32 %v1096, %v1647
      %1649 = vmatmul.bf16.gmra.mxu0 %v783
      %v1650 = vpop.f32.mrf.mxu0
      %v1651 = vadd.f32 %v1104, %v1650
      %v1652 = vpop.f32.mrf.mxu0
      %v1653 = vadd.f32 %v1112, %v1652
      %1654 = vmatmul.bf16.gmra.mxu0 %v784
      %v1655 = vpop.f32.mrf.mxu0
      %v1656 = vadd.f32 %v1120, %v1655
      %v1657 = vpop.f32.mrf.mxu0
      %v1658 = vadd.f32 %v1128, %v1657
      %1659 = vmatmul.bf16.gmra.mxu0 %v785
      %v1660 = vpop.f32.mrf.mxu0
      %v1661 = vadd.f32 %v1136, %v1660
      %v1662 = vpop.f32.mrf.mxu0
      %v1663 = vadd.f32 %v1144, %v1662
      %1664 = vmatmul.bf16.gmra.mxu0 %v786
      %v1665 = vpop.f32.mrf.mxu0
      %v1666 = vadd.f32 %v1152, %v1665
      %v1667 = vpop.f32.mrf.mxu0
      %v1668 = vadd.f32 %v1160, %v1667
      %1669 = vmatmul.bf16.gmra.mxu0 %v787
      %v1670 = vpop.f32.mrf.mxu0
      %v1671 = vadd.f32 %v1168, %v1670
      %v1672 = vpop.f32.mrf.mxu0
      %v1673 = vadd.f32 %v1176, %v1672
      %1674 = vmatmul.bf16.gmra.mxu0 %v788
      %v1675 = vpop.f32.mrf.mxu0
      %v1676 = vadd.f32 %v1184, %v1675
      %v1677 = vpop.f32.mrf.mxu0
      %v1678 = vadd.f32 %v1192, %v1677
      %1679 = vmatmul.bf16.gmra.mxu0 %v789
      %v1680 = vpop.f32.mrf.mxu0
      %v1681 = vadd.f32 %v1200, %v1680
      %v1682 = vpop.f32.mrf.mxu0
      %v1683 = vadd.f32 %v1208, %v1682
      %1684 = vmatmul.bf16.gmra.mxu0 %v790
      %v1685 = vpop.f32.mrf.mxu0
      %v1686 = vadd.f32 %v1216, %v1685
      %v1687 = vpop.f32.mrf.mxu0
      %1688 = vdwg.mxu0
      %1689 = vmatpush.bf16.msra.mxu0 %v1473
      %1690 = vmatpush.bf16.msra.mxu0 %v1465
      %1691 = vmatpush.bf16.msra.mxu0 %v1457
      %1692 = vmatpush.bf16.msra.mxu0 %v1449
      %1693 = vmatpush.bf16.msra.mxu0 %v1441
      %1694 = vmatpush.bf16.msra.mxu0 %v1433
      %1695 = vmatpush.bf16.msra.mxu0 %v1425
      %1696 = vmatpush.bf16.msra.mxu0 %v1417
      %1697 = vmatmul.bf16.gmra.mxu0 %v778
      %v1698 = vpop.f32.mrf.mxu0
      %v1699 = vadd.f32 %v1025, %v1698
      %v1700 = vpop.f32.mrf.mxu0
      %v1701 = vadd.f32 %v1033, %v1700
      %1702 = vmatmul.bf16.gmra.mxu0 %v779
      %v1703 = vpop.f32.mrf.mxu0
      %v1704 = vadd.f32 %v1041, %v1703
      %v1705 = vpop.f32.mrf.mxu0
      %v1706 = vadd.f32 %v1049, %v1705
      %1707 = vmatmul.bf16.gmra.mxu0 %v780
      %v1708 = vpop.f32.mrf.mxu0
      %v1709 = vadd.f32 %v1057, %v1708
      %v1710 = vpop.f32.mrf.mxu0
      %v1711 = vadd.f32 %v1065, %v1710
      %1712 = vmatmul.bf16.gmra.mxu0 %v781
      %v1713 = vpop.f32.mrf.mxu0
      %v1714 = vadd.f32 %v1073, %v1713
      %v1715 = vpop.f32.mrf.mxu0
      %v1716 = vadd.f32 %v1081, %v1715
      %1717 = vmatmul.bf16.gmra.mxu0 %v782
      %v1718 = vpop.f32.mrf.mxu0
      %v1719 = vadd.f32 %v1089, %v1718
      %v1720 = vpop.f32.mrf.mxu0
      %v1721 = vadd.f32 %v1097, %v1720
      %1722 = vmatmul.bf16.gmra.mxu0 %v783
      %v1723 = vpop.f32.mrf.mxu0
      %v1724 = vadd.f32 %v1105, %v1723
      %v1725 = vpop.f32.mrf.mxu0
      %v1726 = vadd.f32 %v1113, %v1725
      %1727 = vmatmul.bf16.gmra.mxu0 %v784
      %v1728 = vpop.f32.mrf.mxu0
      %v1729 = vadd.f32 %v1121, %v1728
      %v1730 = vpop.f32.mrf.mxu0
      %v1731 = vadd.f32 %v1129, %v1730
      %1732 = vmatmul.bf16.gmra.mxu0 %v785
      %v1733 = vpop.f32.mrf.mxu0
      %v1734 = vadd.f32 %v1137, %v1733
      %v1735 = vpop.f32.mrf.mxu0
      %v1736 = vadd.f32 %v1145, %v1735
      %1737 = vmatmul.bf16.gmra.mxu0 %v786
      %v1738 = vpop.f32.mrf.mxu0
      %v1739 = vadd.f32 %v1153, %v1738
      %v1740 = vpop.f32.mrf.mxu0
      %v1741 = vadd.f32 %v1161, %v1740
      %1742 = vmatmul.bf16.gmra.mxu0 %v787
      %v1743 = vpop.f32.mrf.mxu0
      %v1744 = vadd.f32 %v1169, %v1743
      %v1745 = vpop.f32.mrf.mxu0
      %v1746 = vadd.f32 %v1177, %v1745
      %1747 = vmatmul.bf16.gmra.mxu0 %v788
      %v1748 = vpop.f32.mrf.mxu0
      %v1749 = vadd.f32 %v1185, %v1748
      %v1750 = vpop.f32.mrf.mxu0
      %v1751 = vadd.f32 %v1193, %v1750
      %1752 = vmatmul.bf16.gmra.mxu0 %v789
      %v1753 = vpop.f32.mrf.mxu0
      %v1754 = vadd.f32 %v1201, %v1753
      %v1755 = vpop.f32.mrf.mxu0
      %v1756 = vadd.f32 %v1209, %v1755
      %1757 = vmatmul.bf16.gmra.mxu0 %v790
      %v1758 = vpop.f32.mrf.mxu0
      %v1759 = vadd.f32 %v1217, %v1758
      %v1760 = vpop.f32.mrf.mxu0
      %1761 = vdwg.mxu0
      %1762 = vmatpush.bf16.msra.mxu0 %v1474
      %1763 = vmatpush.bf16.msra.mxu0 %v1466
      %1764 = vmatpush.bf16.msra.mxu0 %v1458
      %1765 = vmatpush.bf16.msra.mxu0 %v1450
      %1766 = vmatpush.bf16.msra.mxu0 %v1442
      %1767 = vmatpush.bf16.msra.mxu0 %v1434
      %1768 = vmatpush.bf16.msra.mxu0 %v1426
      %1769 = vmatpush.bf16.msra.mxu0 %v1418
      %1770 = vmatmul.bf16.gmra.mxu0 %v778
      %v1771 = vpop.f32.mrf.mxu0
      %v1772 = vadd.f32 %v1026, %v1771
      %v1773 = vpop.f32.mrf.mxu0
      %v1774 = vadd.f32 %v1034, %v1773
      %1775 = vmatmul.bf16.gmra.mxu0 %v779
      %v1776 = vpop.f32.mrf.mxu0
      %v1777 = vadd.f32 %v1042, %v1776
      %v1778 = vpop.f32.mrf.mxu0
      %v1779 = vadd.f32 %v1050, %v1778
      %1780 = vmatmul.bf16.gmra.mxu0 %v780
      %v1781 = vpop.f32.mrf.mxu0
      %v1782 = vadd.f32 %v1058, %v1781
      %v1783 = vpop.f32.mrf.mxu0
      %v1784 = vadd.f32 %v1066, %v1783
      %1785 = vmatmul.bf16.gmra.mxu0 %v781
      %v1786 = vpop.f32.mrf.mxu0
      %v1787 = vadd.f32 %v1074, %v1786
      %v1788 = vpop.f32.mrf.mxu0
      %v1789 = vadd.f32 %v1082, %v1788
      %1790 = vmatmul.bf16.gmra.mxu0 %v782
      %v1791 = vpop.f32.mrf.mxu0
      %v1792 = vadd.f32 %v1090, %v1791
      %v1793 = vpop.f32.mrf.mxu0
      %v1794 = vadd.f32 %v1098, %v1793
      %1795 = vmatmul.bf16.gmra.mxu0 %v783
      %v1796 = vpop.f32.mrf.mxu0
      %v1797 = vadd.f32 %v1106, %v1796
      %v1798 = vpop.f32.mrf.mxu0
      %v1799 = vadd.f32 %v1114, %v1798
      %1800 = vmatmul.bf16.gmra.mxu0 %v784
      %v1801 = vpop.f32.mrf.mxu0
      %v1802 = vadd.f32 %v1122, %v1801
      %v1803 = vpop.f32.mrf.mxu0
      %v1804 = vadd.f32 %v1130, %v1803
      %1805 = vmatmul.bf16.gmra.mxu0 %v785
      %v1806 = vpop.f32.mrf.mxu0
      %v1807 = vadd.f32 %v1138, %v1806
      %v1808 = vpop.f32.mrf.mxu0
      %v1809 = vadd.f32 %v1146, %v1808
      %1810 = vmatmul.bf16.gmra.mxu0 %v786
      %v1811 = vpop.f32.mrf.mxu0
      %v1812 = vadd.f32 %v1154, %v1811
      %v1813 = vpop.f32.mrf.mxu0
      %v1814 = vadd.f32 %v1162, %v1813
      %1815 = vmatmul.bf16.gmra.mxu0 %v787
      %v1816 = vpop.f32.mrf.mxu0
      %v1817 = vadd.f32 %v1170, %v1816
      %v1818 = vpop.f32.mrf.mxu0
      %v1819 = vadd.f32 %v1178, %v1818
      %1820 = vmatmul.bf16.gmra.mxu0 %v788
      %v1821 = vpop.f32.mrf.mxu0
      %v1822 = vadd.f32 %v1186, %v1821
      %v1823 = vpop.f32.mrf.mxu0
      %v1824 = vadd.f32 %v1194, %v1823
      %1825 = vmatmul.bf16.gmra.mxu0 %v789
      %v1826 = vpop.f32.mrf.mxu0
      %v1827 = vadd.f32 %v1202, %v1826
      %v1828 = vpop.f32.mrf.mxu0
      %v1829 = vadd.f32 %v1210, %v1828
      %1830 = vmatmul.bf16.gmra.mxu0 %v790
      %v1831 = vpop.f32.mrf.mxu0
      %v1832 = vadd.f32 %v1218, %v1831
      %v1833 = vpop.f32.mrf.mxu0
      %1834 = vdwg.mxu0
      %1835 = vmatpush.bf16.msra.mxu0 %v1475
      %1836 = vmatpush.bf16.msra.mxu0 %v1467
      %1837 = vmatpush.bf16.msra.mxu0 %v1459
      %1838 = vmatpush.bf16.msra.mxu0 %v1451
      %1839 = vmatpush.bf16.msra.mxu0 %v1443
      %1840 = vmatpush.bf16.msra.mxu0 %v1435
      %1841 = vmatpush.bf16.msra.mxu0 %v1427
      %1842 = vmatpush.bf16.msra.mxu0 %v1419
      %1843 = vmatmul.bf16.gmra.mxu0 %v778
      %v1844 = vpop.f32.mrf.mxu0
      %v1845 = vadd.f32 %v1027, %v1844
      %v1846 = vpop.f32.mrf.mxu0
      %v1847 = vadd.f32 %v1035, %v1846
      %1848 = vmatmul.bf16.gmra.mxu0 %v779
      %v1849 = vpop.f32.mrf.mxu0
      %v1850 = vadd.f32 %v1043, %v1849
      %v1851 = vpop.f32.mrf.mxu0
      %v1852 = vadd.f32 %v1051, %v1851
      %1853 = vmatmul.bf16.gmra.mxu0 %v780
      %v1854 = vpop.f32.mrf.mxu0
      %v1855 = vadd.f32 %v1059, %v1854
      %v1856 = vpop.f32.mrf.mxu0
      %v1857 = vadd.f32 %v1067, %v1856
      %1858 = vmatmul.bf16.gmra.mxu0 %v781
      %v1859 = vpop.f32.mrf.mxu0
      %v1860 = vadd.f32 %v1075, %v1859
      %v1861 = vpop.f32.mrf.mxu0
      %v1862 = vadd.f32 %v1083, %v1861
      %1863 = vmatmul.bf16.gmra.mxu0 %v782
      %v1864 = vpop.f32.mrf.mxu0
      %v1865 = vadd.f32 %v1091, %v1864
      %v1866 = vpop.f32.mrf.mxu0
      %v1867 = vadd.f32 %v1099, %v1866
      %1868 = vmatmul.bf16.gmra.mxu0 %v783
      %v1869 = vpop.f32.mrf.mxu0
      %v1870 = vadd.f32 %v1107, %v1869
      %v1871 = vpop.f32.mrf.mxu0
      %v1872 = vadd.f32 %v1115, %v1871
      %1873 = vmatmul.bf16.gmra.mxu0 %v784
      %v1874 = vpop.f32.mrf.mxu0
      %v1875 = vadd.f32 %v1123, %v1874
      %v1876 = vpop.f32.mrf.mxu0
      %v1877 = vadd.f32 %v1131, %v1876
      %1878 = vmatmul.bf16.gmra.mxu0 %v785
      %v1879 = vpop.f32.mrf.mxu0
      %v1880 = vadd.f32 %v1139, %v1879
      %v1881 = vpop.f32.mrf.mxu0
      %v1882 = vadd.f32 %v1147, %v1881
      %1883 = vmatmul.bf16.gmra.mxu0 %v786
      %v1884 = vpop.f32.mrf.mxu0
      %v1885 = vadd.f32 %v1155, %v1884
      %v1886 = vpop.f32.mrf.mxu0
      %v1887 = vadd.f32 %v1163, %v1886
      %1888 = vmatmul.bf16.gmra.mxu0 %v787
      %v1889 = vpop.f32.mrf.mxu0
      %v1890 = vadd.f32 %v1171, %v1889
      %v1891 = vpop.f32.mrf.mxu0
      %v1892 = vadd.f32 %v1179, %v1891
      %1893 = vmatmul.bf16.gmra.mxu0 %v788
      %v1894 = vpop.f32.mrf.mxu0
      %v1895 = vadd.f32 %v1187, %v1894
      %v1896 = vpop.f32.mrf.mxu0
      %v1897 = vadd.f32 %v1195, %v1896
      %1898 = vmatmul.bf16.gmra.mxu0 %v789
      %v1899 = vpop.f32.mrf.mxu0
      %v1900 = vadd.f32 %v1203, %v1899
      %v1901 = vpop.f32.mrf.mxu0
      %v1902 = vadd.f32 %v1211, %v1901
      %1903 = vmatmul.bf16.gmra.mxu0 %v790
      %v1904 = vpop.f32.mrf.mxu0
      %v1905 = vadd.f32 %v1219, %v1904
      %v1906 = vpop.f32.mrf.mxu0
      %1907 = vdwg.mxu0
      %1908 = vmatpush.bf16.msra.mxu0 %v1476
      %1909 = vmatpush.bf16.msra.mxu0 %v1468
      %1910 = vmatpush.bf16.msra.mxu0 %v1460
      %1911 = vmatpush.bf16.msra.mxu0 %v1452
      %1912 = vmatpush.bf16.msra.mxu0 %v1444
      %1913 = vmatpush.bf16.msra.mxu0 %v1436
      %1914 = vmatpush.bf16.msra.mxu0 %v1428
      %1915 = vmatpush.bf16.msra.mxu0 %v1420
      %1916 = vmatmul.bf16.gmra.mxu0 %v778
      %v1917 = vpop.f32.mrf.mxu0
      %v1918 = vadd.f32 %v1028, %v1917
      %v1919 = vpop.f32.mrf.mxu0
      %v1920 = vadd.f32 %v1036, %v1919
      %1921 = vmatmul.bf16.gmra.mxu0 %v779
      %v1922 = vpop.f32.mrf.mxu0
      %v1923 = vadd.f32 %v1044, %v1922
      %v1924 = vpop.f32.mrf.mxu0
      %v1925 = vadd.f32 %v1052, %v1924
      %1926 = vmatmul.bf16.gmra.mxu0 %v780
      %v1927 = vpop.f32.mrf.mxu0
      %v1928 = vadd.f32 %v1060, %v1927
      %v1929 = vpop.f32.mrf.mxu0
      %v1930 = vadd.f32 %v1068, %v1929
      %1931 = vmatmul.bf16.gmra.mxu0 %v781
      %v1932 = vpop.f32.mrf.mxu0
      %v1933 = vadd.f32 %v1076, %v1932
      %v1934 = vpop.f32.mrf.mxu0
      %v1935 = vadd.f32 %v1084, %v1934
      %1936 = vmatmul.bf16.gmra.mxu0 %v782
      %v1937 = vpop.f32.mrf.mxu0
      %v1938 = vadd.f32 %v1092, %v1937
      %v1939 = vpop.f32.mrf.mxu0
      %v1940 = vadd.f32 %v1100, %v1939
      %1941 = vmatmul.bf16.gmra.mxu0 %v783
      %v1942 = vpop.f32.mrf.mxu0
      %v1943 = vadd.f32 %v1108, %v1942
      %v1944 = vpop.f32.mrf.mxu0
      %v1945 = vadd.f32 %v1116, %v1944
      %1946 = vmatmul.bf16.gmra.mxu0 %v784
      %v1947 = vpop.f32.mrf.mxu0
      %v1948 = vadd.f32 %v1124, %v1947
      %v1949 = vpop.f32.mrf.mxu0
      %v1950 = vadd.f32 %v1132, %v1949
      %1951 = vmatmul.bf16.gmra.mxu0 %v785
      %v1952 = vpop.f32.mrf.mxu0
      %v1953 = vadd.f32 %v1140, %v1952
      %v1954 = vpop.f32.mrf.mxu0
      %v1955 = vadd.f32 %v1148, %v1954
      %1956 = vmatmul.bf16.gmra.mxu0 %v786
      %v1957 = vpop.f32.mrf.mxu0
      %v1958 = vadd.f32 %v1156, %v1957
      %v1959 = vpop.f32.mrf.mxu0
      %v1960 = vadd.f32 %v1164, %v1959
      %1961 = vmatmul.bf16.gmra.mxu0 %v787
      %v1962 = vpop.f32.mrf.mxu0
      %v1963 = vadd.f32 %v1172, %v1962
      %v1964 = vpop.f32.mrf.mxu0
      %v1965 = vadd.f32 %v1180, %v1964
      %1966 = vmatmul.bf16.gmra.mxu0 %v788
      %v1967 = vpop.f32.mrf.mxu0
      %v1968 = vadd.f32 %v1188, %v1967
      %v1969 = vpop.f32.mrf.mxu0
      %v1970 = vadd.f32 %v1196, %v1969
      %1971 = vmatmul.bf16.gmra.mxu0 %v789
      %v1972 = vpop.f32.mrf.mxu0
      %v1973 = vadd.f32 %v1204, %v1972
      %v1974 = vpop.f32.mrf.mxu0
      %v1975 = vadd.f32 %v1212, %v1974
      %1976 = vmatmul.bf16.gmra.mxu0 %v790
      %v1977 = vpop.f32.mrf.mxu0
      %v1978 = vadd.f32 %v1220, %v1977
      %v1979 = vpop.f32.mrf.mxu0
      %1980 = vdwg.mxu0
      %1981 = vmatpush.bf16.msra.mxu0 %v1477
      %1982 = vmatpush.bf16.msra.mxu0 %v1469
      %1983 = vmatpush.bf16.msra.mxu0 %v1461
      %1984 = vmatpush.bf16.msra.mxu0 %v1453
      %1985 = vmatpush.bf16.msra.mxu0 %v1445
      %1986 = vmatpush.bf16.msra.mxu0 %v1437
      %1987 = vmatpush.bf16.msra.mxu0 %v1429
      %1988 = vmatpush.bf16.msra.mxu0 %v1421
      %1989 = vmatmul.bf16.gmra.mxu0 %v778
      %v1990 = vpop.f32.mrf.mxu0
      %v1991 = vadd.f32 %v1029, %v1990
      %v1992 = vpop.f32.mrf.mxu0
      %v1993 = vadd.f32 %v1037, %v1992
      %1994 = vmatmul.bf16.gmra.mxu0 %v779
      %v1995 = vpop.f32.mrf.mxu0
      %v1996 = vadd.f32 %v1045, %v1995
      %v1997 = vpop.f32.mrf.mxu0
      %v1998 = vadd.f32 %v1053, %v1997
      %1999 = vmatmul.bf16.gmra.mxu0 %v780
      %v2000 = vpop.f32.mrf.mxu0
      %v2001 = vadd.f32 %v1061, %v2000
      %v2002 = vpop.f32.mrf.mxu0
      %v2003 = vadd.f32 %v1069, %v2002
      %2004 = vmatmul.bf16.gmra.mxu0 %v781
      %v2005 = vpop.f32.mrf.mxu0
      %v2006 = vadd.f32 %v1077, %v2005
      %v2007 = vpop.f32.mrf.mxu0
      %v2008 = vadd.f32 %v1085, %v2007
      %2009 = vmatmul.bf16.gmra.mxu0 %v782
      %v2010 = vpop.f32.mrf.mxu0
      %v2011 = vadd.f32 %v1093, %v2010
      %v2012 = vpop.f32.mrf.mxu0
      %v2013 = vadd.f32 %v1101, %v2012
      %2014 = vmatmul.bf16.gmra.mxu0 %v783
      %v2015 = vpop.f32.mrf.mxu0
      %v2016 = vadd.f32 %v1109, %v2015
      %v2017 = vpop.f32.mrf.mxu0
      %v2018 = vadd.f32 %v1117, %v2017
      %2019 = vmatmul.bf16.gmra.mxu0 %v784
      %v2020 = vpop.f32.mrf.mxu0
      %v2021 = vadd.f32 %v1125, %v2020
      %v2022 = vpop.f32.mrf.mxu0
      %v2023 = vadd.f32 %v1133, %v2022
      %2024 = vmatmul.bf16.gmra.mxu0 %v785
      %v2025 = vpop.f32.mrf.mxu0
      %v2026 = vadd.f32 %v1141, %v2025
      %v2027 = vpop.f32.mrf.mxu0
      %v2028 = vadd.f32 %v1149, %v2027
      %2029 = vmatmul.bf16.gmra.mxu0 %v786
      %v2030 = vpop.f32.mrf.mxu0
      %v2031 = vadd.f32 %v1157, %v2030
      %v2032 = vpop.f32.mrf.mxu0
      %v2033 = vadd.f32 %v1165, %v2032
      %2034 = vmatmul.bf16.gmra.mxu0 %v787
      %v2035 = vpop.f32.mrf.mxu0
      %v2036 = vadd.f32 %v1173, %v2035
      %v2037 = vpop.f32.mrf.mxu0
      %v2038 = vadd.f32 %v1181, %v2037
      %2039 = vmatmul.bf16.gmra.mxu0 %v788
      %v2040 = vpop.f32.mrf.mxu0
      %v2041 = vadd.f32 %v1189, %v2040
      %v2042 = vpop.f32.mrf.mxu0
      %v2043 = vadd.f32 %v1197, %v2042
      %2044 = vmatmul.bf16.gmra.mxu0 %v789
      %v2045 = vpop.f32.mrf.mxu0
      %v2046 = vadd.f32 %v1205, %v2045
      %v2047 = vpop.f32.mrf.mxu0
      %v2048 = vadd.f32 %v1213, %v2047
      %2049 = vmatmul.bf16.gmra.mxu0 %v790
      %v2050 = vpop.f32.mrf.mxu0
      %v2051 = vadd.f32 %v1221, %v2050
      %v2052 = vpop.f32.mrf.mxu0
      %2053 = vdwg.mxu0
      %2054 = vmatpush.bf16.msra.mxu0 %v1478
      %2055 = vmatpush.bf16.msra.mxu0 %v1470
      %2056 = vmatpush.bf16.msra.mxu0 %v1462
      %2057 = vmatpush.bf16.msra.mxu0 %v1454
      %2058 = vmatpush.bf16.msra.mxu0 %v1446
      %2059 = vmatpush.bf16.msra.mxu0 %v1438
      %2060 = vmatpush.bf16.msra.mxu0 %v1430
      %2061 = vmatpush.bf16.msra.mxu0 %v1422
      %2062 = vmatmul.bf16.gmra.mxu0 %v778
      %v2063 = vpop.f32.mrf.mxu0
      %v2064 = vadd.f32 %v1030, %v2063
      %v2065 = vpop.f32.mrf.mxu0
      %v2066 = vadd.f32 %v1038, %v2065
      %2067 = vmatmul.bf16.gmra.mxu0 %v779
      %v2068 = vpop.f32.mrf.mxu0
      %v2069 = vadd.f32 %v1046, %v2068
      %v2070 = vpop.f32.mrf.mxu0
      %v2071 = vadd.f32 %v1054, %v2070
      %2072 = vmatmul.bf16.gmra.mxu0 %v780
      %v2073 = vpop.f32.mrf.mxu0
      %v2074 = vadd.f32 %v1062, %v2073
      %v2075 = vpop.f32.mrf.mxu0
      %v2076 = vadd.f32 %v1070, %v2075
      %2077 = vmatmul.bf16.gmra.mxu0 %v781
      %v2078 = vpop.f32.mrf.mxu0
      %v2079 = vadd.f32 %v1078, %v2078
      %v2080 = vpop.f32.mrf.mxu0
      %v2081 = vadd.f32 %v1086, %v2080
      %2082 = vmatmul.bf16.gmra.mxu0 %v782
      %v2083 = vpop.f32.mrf.mxu0
      %v2084 = vadd.f32 %v1094, %v2083
      %v2085 = vpop.f32.mrf.mxu0
      %v2086 = vadd.f32 %v1102, %v2085
      %2087 = vmatmul.bf16.gmra.mxu0 %v783
      %v2088 = vpop.f32.mrf.mxu0
      %v2089 = vadd.f32 %v1110, %v2088
      %v2090 = vpop.f32.mrf.mxu0
      %v2091 = vadd.f32 %v1118, %v2090
      %2092 = vmatmul.bf16.gmra.mxu0 %v784
      %v2093 = vpop.f32.mrf.mxu0
      %v2094 = vadd.f32 %v1126, %v2093
      %v2095 = vpop.f32.mrf.mxu0
      %v2096 = vadd.f32 %v1134, %v2095
      %2097 = vmatmul.bf16.gmra.mxu0 %v785
      %v2098 = vpop.f32.mrf.mxu0
      %v2099 = vadd.f32 %v1142, %v2098
      %v2100 = vpop.f32.mrf.mxu0
      %v2101 = vadd.f32 %v1150, %v2100
      %2102 = vmatmul.bf16.gmra.mxu0 %v786
      %v2103 = vpop.f32.mrf.mxu0
      %v2104 = vadd.f32 %v1158, %v2103
      %v2105 = vpop.f32.mrf.mxu0
      %v2106 = vadd.f32 %v1166, %v2105
      %2107 = vmatmul.bf16.gmra.mxu0 %v787
      %v2108 = vpop.f32.mrf.mxu0
      %v2109 = vadd.f32 %v1174, %v2108
      %v2110 = vpop.f32.mrf.mxu0
      %v2111 = vadd.f32 %v1182, %v2110
      %2112 = vmatmul.bf16.gmra.mxu0 %v788
      %v2113 = vpop.f32.mrf.mxu0
      %v2114 = vadd.f32 %v1190, %v2113
      %v2115 = vpop.f32.mrf.mxu0
      %v2116 = vadd.f32 %v1198, %v2115
      %2117 = vmatmul.bf16.gmra.mxu0 %v789
      %v2118 = vpop.f32.mrf.mxu0
      %v2119 = vadd.f32 %v1206, %v2118
      %v2120 = vpop.f32.mrf.mxu0
      %v2121 = vadd.f32 %v1214, %v2120
      %2122 = vmatmul.bf16.gmra.mxu0 %v790
      %v2123 = vpop.f32.mrf.mxu0
      %v2124 = vadd.f32 %v1222, %v2123
      %v2125 = vpop.f32.mrf.mxu0
      %2126 = vdwg.mxu0
      %v2127 = vpack.c.bf16 %v1555, %v1553
      %v2128 = vpack.c.bf16 %v1628, %v1626
      %v2129 = vpack.c.bf16 %v1701, %v1699
      %v2130 = vpack.c.bf16 %v1774, %v1772
      %v2131 = vpack.c.bf16 %v1847, %v1845
      %v2132 = vpack.c.bf16 %v1920, %v1918
      %v2133 = vpack.c.bf16 %v1993, %v1991
      %v2134 = vpack.c.bf16 %v2066, %v2064
      %v2135 = vpack.c.bf16 %v1560, %v1558
      %v2136 = vpack.c.bf16 %v1633, %v1631
      %v2137 = vpack.c.bf16 %v1706, %v1704
      %v2138 = vpack.c.bf16 %v1779, %v1777
      %v2139 = vpack.c.bf16 %v1852, %v1850
      %v2140 = vpack.c.bf16 %v1925, %v1923
      %v2141 = vpack.c.bf16 %v1998, %v1996
      %v2142 = vpack.c.bf16 %v2071, %v2069
      %v2143 = vpack.c.bf16 %v1565, %v1563
      %v2144 = vpack.c.bf16 %v1638, %v1636
      %v2145 = vpack.c.bf16 %v1711, %v1709
      %v2146 = vpack.c.bf16 %v1784, %v1782
      %v2147 = vpack.c.bf16 %v1857, %v1855
      %v2148 = vpack.c.bf16 %v1930, %v1928
      %v2149 = vpack.c.bf16 %v2003, %v2001
      %v2150 = vpack.c.bf16 %v2076, %v2074
      %v2151 = vpack.c.bf16 %v1570, %v1568
      %v2152 = vpack.c.bf16 %v1643, %v1641
      %v2153 = vpack.c.bf16 %v1716, %v1714
      %v2154 = vpack.c.bf16 %v1789, %v1787
      %v2155 = vpack.c.bf16 %v1862, %v1860
      %v2156 = vpack.c.bf16 %v1935, %v1933
      %v2157 = vpack.c.bf16 %v2008, %v2006
      %v2158 = vpack.c.bf16 %v2081, %v2079
      %v2159 = vpack.c.bf16 %v1575, %v1573
      %v2160 = vpack.c.bf16 %v1648, %v1646
      %v2161 = vpack.c.bf16 %v1721, %v1719
      %v2162 = vpack.c.bf16 %v1794, %v1792
      %v2163 = vpack.c.bf16 %v1867, %v1865
      %v2164 = vpack.c.bf16 %v1940, %v1938
      %v2165 = vpack.c.bf16 %v2013, %v2011
      %v2166 = vpack.c.bf16 %v2086, %v2084
      %v2167 = vpack.c.bf16 %v1580, %v1578
      %v2168 = vpack.c.bf16 %v1653, %v1651
      %v2169 = vpack.c.bf16 %v1726, %v1724
      %v2170 = vpack.c.bf16 %v1799, %v1797
      %v2171 = vpack.c.bf16 %v1872, %v1870
      %v2172 = vpack.c.bf16 %v1945, %v1943
      %v2173 = vpack.c.bf16 %v2018, %v2016
      %v2174 = vpack.c.bf16 %v2091, %v2089
      %v2175 = vpack.c.bf16 %v1585, %v1583
      %v2176 = vpack.c.bf16 %v1658, %v1656
      %v2177 = vpack.c.bf16 %v1731, %v1729
      %v2178 = vpack.c.bf16 %v1804, %v1802
      %v2179 = vpack.c.bf16 %v1877, %v1875
      %v2180 = vpack.c.bf16 %v1950, %v1948
      %v2181 = vpack.c.bf16 %v2023, %v2021
      %v2182 = vpack.c.bf16 %v2096, %v2094
      %v2183 = vpack.c.bf16 %v1590, %v1588
      %v2184 = vpack.c.bf16 %v1663, %v1661
      %v2185 = vpack.c.bf16 %v1736, %v1734
      %v2186 = vpack.c.bf16 %v1809, %v1807
      %v2187 = vpack.c.bf16 %v1882, %v1880
      %v2188 = vpack.c.bf16 %v1955, %v1953
      %v2189 = vpack.c.bf16 %v2028, %v2026
      %v2190 = vpack.c.bf16 %v2101, %v2099
      %v2191 = vpack.c.bf16 %v1595, %v1593
      %v2192 = vpack.c.bf16 %v1668, %v1666
      %v2193 = vpack.c.bf16 %v1741, %v1739
      %v2194 = vpack.c.bf16 %v1814, %v1812
      %v2195 = vpack.c.bf16 %v1887, %v1885
      %v2196 = vpack.c.bf16 %v1960, %v1958
      %v2197 = vpack.c.bf16 %v2033, %v2031
      %v2198 = vpack.c.bf16 %v2106, %v2104
      %v2199 = vpack.c.bf16 %v1600, %v1598
      %v2200 = vpack.c.bf16 %v1673, %v1671
      %v2201 = vpack.c.bf16 %v1746, %v1744
      %v2202 = vpack.c.bf16 %v1819, %v1817
      %v2203 = vpack.c.bf16 %v1892, %v1890
      %v2204 = vpack.c.bf16 %v1965, %v1963
      %v2205 = vpack.c.bf16 %v2038, %v2036
      %v2206 = vpack.c.bf16 %v2111, %v2109
      %v2207 = vpack.c.bf16 %v1605, %v1603
      %v2208 = vpack.c.bf16 %v1678, %v1676
      %v2209 = vpack.c.bf16 %v1751, %v1749
      %v2210 = vpack.c.bf16 %v1824, %v1822
      %v2211 = vpack.c.bf16 %v1897, %v1895
      %v2212 = vpack.c.bf16 %v1970, %v1968
      %v2213 = vpack.c.bf16 %v2043, %v2041
      %v2214 = vpack.c.bf16 %v2116, %v2114
      %v2215 = vpack.c.bf16 %v1610, %v1608
      %v2216 = vpack.c.bf16 %v1683, %v1681
      %v2217 = vpack.c.bf16 %v1756, %v1754
      %v2218 = vpack.c.bf16 %v1829, %v1827
      %v2219 = vpack.c.bf16 %v1902, %v1900
      %v2220 = vpack.c.bf16 %v1975, %v1973
      %v2221 = vpack.c.bf16 %v2048, %v2046
      %v2222 = vpack.c.bf16 %v2121, %v2119
      %v2223 = vpack.c.bf16 %v1613, %v1613
      %v2224 = vpack.c.bf16 %v1686, %v1686
      %v2225 = vpack.c.bf16 %v1759, %v1759
      %v2226 = vpack.c.bf16 %v1832, %v1832
      %v2227 = vpack.c.bf16 %v1905, %v1905
      %v2228 = vpack.c.bf16 %v1978, %v1978
      %v2229 = vpack.c.bf16 %v2051, %v2051
      %v2230 = vpack.c.bf16 %v2124, %v2124
      %v2231 = vld [vmem:[%s7] sm:$0xf]
      %v2232 = vld [vmem:[%s7 + $0x4] sm:$0xf]
      %v2233 = vld [vmem:[%s7 + $0x8] sm:$0xf]
      %v2234 = vld [vmem:[%s7 + $0xc] sm:$0xf]
      %v2235 = vld [vmem:[%s7 + $0x10] sm:$0xf]
      %v2236 = vld [vmem:[%s7 + $0x14] sm:$0xf]
      %v2237 = vld [vmem:[%s7 + $0x18] sm:$0xf]
      %v2238 = vld [vmem:[%s7 + $0x1c] sm:$0xf]
      %v2239 = vld [vmem:[%s7 + $0x20] sm:$0xf]
      %v2240 = vld [vmem:[%s7 + $0x24] sm:$0xf]
      %v2241 = vld [vmem:[%s7 + $0x28] sm:$0xf]
      %v2242 = vld [vmem:[%s7 + $0x2c] sm:$0xf]
      %v2243 = vld [vmem:[%s7 + $0x30] sm:$0xf]
      %v2244 = vld [vmem:[%s7 + $0x34] sm:$0xf]
      %v2245 = vld [vmem:[%s7 + $0x38] sm:$0xf]
      %v2246 = vld [vmem:[%s7 + $0x3c] sm:$0xf]
      %v2247 = vld [vmem:[%s7 + $0x40] sm:$0xf]
      %v2248 = vld [vmem:[%s7 + $0x44] sm:$0xf]
      %v2249 = vld [vmem:[%s7 + $0x48] sm:$0xf]
      %v2250 = vld [vmem:[%s7 + $0x4c] sm:$0xf]
      %v2251 = vld [vmem:[%s7 + $0x50] sm:$0xf]
      %v2252 = vld [vmem:[%s7 + $0x54] sm:$0xf]
      %v2253 = vld [vmem:[%s7 + $0x58] sm:$0xf]
      %v2254 = vld [vmem:[%s7 + $0x5c] sm:$0xf]
      %v2255 = vld [vmem:[%s7 + $0x60] sm:$0xf]
      %v2256 = vld [vmem:[%s7 + $0x64] sm:$0xf]
      %v2257 = vld [vmem:[%s7 + $0x68] sm:$0xf]
      %v2258 = vld [vmem:[%s7 + $0x6c] sm:$0xf]
      %v2259 = vld [vmem:[%s7 + $0x70] sm:$0xf]
      %v2260 = vld [vmem:[%s7 + $0x74] sm:$0xf]
      %v2261 = vld [vmem:[%s7 + $0x78] sm:$0xf]
      %v2262 = vld [vmem:[%s7 + $0x7c] sm:$0xf]
      %v2263 = vld [vmem:[%s7 + $0x80] sm:$0xf]
      %v2264 = vld [vmem:[%s7 + $0x84] sm:$0xf]
      %v2265 = vld [vmem:[%s7 + $0x88] sm:$0xf]
      %v2266 = vld [vmem:[%s7 + $0x8c] sm:$0xf]
      %v2267 = vld [vmem:[%s7 + $0x90] sm:$0xf]
      %v2268 = vld [vmem:[%s7 + $0x94] sm:$0xf]
      %v2269 = vld [vmem:[%s7 + $0x98] sm:$0xf]
      %v2270 = vld [vmem:[%s7 + $0x9c] sm:$0xf]
      %v2271 = vld [vmem:[%s7 + $0xa0] sm:$0xf]
      %v2272 = vld [vmem:[%s7 + $0xa4] sm:$0xf]
      %v2273 = vld [vmem:[%s7 + $0xa8] sm:$0xf]
      %v2274 = vld [vmem:[%s7 + $0xac] sm:$0xf]
      %v2275 = vld [vmem:[%s7 + $0xb0] sm:$0xf]
      %v2276 = vld [vmem:[%s7 + $0xb4] sm:$0xf]
      %v2277 = vld [vmem:[%s7 + $0xb8] sm:$0xf]
      %v2278 = vld [vmem:[%s7 + $0xbc] sm:$0xf]
      %v2279 = vld [vmem:[%s7 + $0xc0] sm:$0xf]
      %v2280 = vld [vmem:[%s7 + $0xc4] sm:$0xf]
      %v2281 = vld [vmem:[%s7 + $0xc8] sm:$0xf]
      %v2282 = vld [vmem:[%s7 + $0xcc] sm:$0xf]
      %v2283 = vld [vmem:[%s7 + $0xd0] sm:$0xf]
      %v2284 = vld [vmem:[%s7 + $0xd4] sm:$0xf]
      %v2285 = vld [vmem:[%s7 + $0xd8] sm:$0xf]
      %v2286 = vld [vmem:[%s7 + $0xdc] sm:$0xf]
      %v2287 = vld [vmem:[%s7 + $0xe0] sm:$0xf]
      %v2288 = vld [vmem:[%s7 + $0xe4] sm:$0xf]
      %v2289 = vld [vmem:[%s7 + $0xe8] sm:$0xf]
      %v2290 = vld [vmem:[%s7 + $0xec] sm:$0xf]
      %v2291 = vld [vmem:[%s7 + $0xf0] sm:$0xf]
      %v2292 = vld [vmem:[%s7 + $0xf4] sm:$0xf]
      %v2293 = vld [vmem:[%s7 + $0xf8] sm:$0xf]
      %v2294 = vld [vmem:[%s7 + $0xfc] sm:$0xf]
      %v2295 = vld [vmem:[%s7 + $0x100] sm:$0xf]
      %v2296 = vld [vmem:[%s7 + $0x104] sm:$0xf]
      %v2297 = vld [vmem:[%s7 + $0x108] sm:$0xf]
      %v2298 = vld [vmem:[%s7 + $0x10c] sm:$0xf]
      %v2299 = vld [vmem:[%s7 + $0x110] sm:$0xf]
      %v2300 = vld [vmem:[%s7 + $0x114] sm:$0xf]
      %v2301 = vld [vmem:[%s7 + $0x118] sm:$0xf]
      %v2302 = vld [vmem:[%s7 + $0x11c] sm:$0xf]
      %v2303 = vld [vmem:[%s7 + $0x120] sm:$0xf]
      %v2304 = vld [vmem:[%s7 + $0x124] sm:$0xf]
      %v2305 = vld [vmem:[%s7 + $0x128] sm:$0xf]
      %v2306 = vld [vmem:[%s7 + $0x12c] sm:$0xf]
      %v2307 = vld [vmem:[%s7 + $0x130] sm:$0xf]
      %v2308 = vld [vmem:[%s7 + $0x134] sm:$0xf]
      %v2309 = vld [vmem:[%s7 + $0x138] sm:$0xf]
      %v2310 = vld [vmem:[%s7 + $0x13c] sm:$0xf]
      %v2311 = vld [vmem:[%s7 + $0x140] sm:$0xf]
      %v2312 = vld [vmem:[%s7 + $0x144] sm:$0xf]
      %v2313 = vld [vmem:[%s7 + $0x148] sm:$0xf]
      %v2314 = vld [vmem:[%s7 + $0x14c] sm:$0xf]
      %v2315 = vld [vmem:[%s7 + $0x150] sm:$0xf]
      %v2316 = vld [vmem:[%s7 + $0x154] sm:$0xf]
      %v2317 = vld [vmem:[%s7 + $0x158] sm:$0xf]
      %v2318 = vld [vmem:[%s7 + $0x15c] sm:$0xf]
      %v2319 = vld [vmem:[%s7 + $0x160] sm:$0xf]
      %v2320 = vld [vmem:[%s7 + $0x164] sm:$0xf]
      %v2321 = vld [vmem:[%s7 + $0x168] sm:$0xf]
      %v2322 = vld [vmem:[%s7 + $0x16c] sm:$0xf]
      %v2323 = vld [vmem:[%s7 + $0x170] sm:$0xf]
      %v2324 = vld [vmem:[%s7 + $0x174] sm:$0xf]
      %v2325 = vld [vmem:[%s7 + $0x178] sm:$0xf]
      %v2326 = vld [vmem:[%s7 + $0x17c] sm:$0xf]
      %v2327 = vld [vmem:[%s7 + $0x180] sm:$0xf]
      %v2328 = vld [vmem:[%s7 + $0x184] sm:$0xf]
      %v2329 = vld [vmem:[%s7 + $0x188] sm:$0xf]
      %v2330 = vld [vmem:[%s7 + $0x18c] sm:$0xf]
      %v2331 = vld [vmem:[%s7 + $0x190] sm:$0xf]
      %v2332 = vld [vmem:[%s7 + $0x194] sm:$0xf]
      %v2333 = vld [vmem:[%s7 + $0x198] sm:$0xf]
      %v2334 = vld [vmem:[%s7 + $0x19c] sm:$0xf]
      %v2335 = vld [vmem:[%s7 + $0x1a0] sm:$0xf]
      %v2336 = vld [vmem:[%s7 + $0x1a4] sm:$0xf]
      %v2337 = vld [vmem:[%s7 + $0x1a8] sm:$0xf]
      %v2338 = vld [vmem:[%s7 + $0x1ac] sm:$0xf]
      %v2339 = vld [vmem:[%s7 + $0x1b0] sm:$0xf]
      %v2340 = vld [vmem:[%s7 + $0x1b4] sm:$0xf]
      %v2341 = vld [vmem:[%s7 + $0x1b8] sm:$0xf]
      %v2342 = vld [vmem:[%s7 + $0x1bc] sm:$0xf]
      %v2343 = vld [vmem:[%s7 + $0x1c0] sm:$0xf]
      %v2344 = vld [vmem:[%s7 + $0x1c4] sm:$0xf]
      %v2345 = vld [vmem:[%s7 + $0x1c8] sm:$0xf]
      %v2346 = vld [vmem:[%s7 + $0x1cc] sm:$0xf]
      %v2347 = vld [vmem:[%s7 + $0x1d0] sm:$0xf]
      %v2348 = vld [vmem:[%s7 + $0x1d4] sm:$0xf]
      %v2349 = vld [vmem:[%s7 + $0x1d8] sm:$0xf]
      %v2350 = vld [vmem:[%s7 + $0x1dc] sm:$0xf]
      %v2351 = vld [vmem:[%s7 + $0x1e0] sm:$0xf]
      %v2352 = vld [vmem:[%s7 + $0x1e4] sm:$0xf]
      %v2353 = vld [vmem:[%s7 + $0x1e8] sm:$0xf]
      %v2354 = vld [vmem:[%s7 + $0x1ec] sm:$0xf]
      %v2355 = vld [vmem:[%s7 + $0x1f0] sm:$0xf]
      %v2356 = vld [vmem:[%s7 + $0x1f4] sm:$0xf]
      %v2357 = vld [vmem:[%s7 + $0x1f8] sm:$0xf]
      %v2358 = vld [vmem:[%s7 + $0x1fc] sm:$0xf]
      %v2359 = vld [vmem:[%s8] sm:$0x1]
      %v2361 = vperm.slane %v2359, 0
      %v2491 = vunpack.c.l.b16 %v2231
      %v2492 = vunpack.c.l.b16 %v2232
      %v2493 = vunpack.c.l.b16 %v2233
      %v2494 = vunpack.c.l.b16 %v2234
      %v2495 = vunpack.c.l.b16 %v2235
      %v2496 = vunpack.c.l.b16 %v2236
      %v2497 = vunpack.c.l.b16 %v2237
      %v2498 = vunpack.c.l.b16 %v2238
      %v2499 = vunpack.c.l.b16 %v2239
      %v2500 = vunpack.c.l.b16 %v2240
      %v2501 = vunpack.c.l.b16 %v2241
      %v2502 = vunpack.c.l.b16 %v2242
      %v2503 = vunpack.c.l.b16 %v2243
      %v2504 = vunpack.c.l.b16 %v2244
      %v2505 = vunpack.c.l.b16 %v2245
      %v2506 = vunpack.c.l.b16 %v2246
      %v2507 = vunpack.c.l.b16 %v2247
      %v2508 = vunpack.c.l.b16 %v2248
      %v2509 = vunpack.c.l.b16 %v2249
      %v2510 = vunpack.c.l.b16 %v2250
      %v2511 = vunpack.c.l.b16 %v2251
      %v2512 = vunpack.c.l.b16 %v2252
      %v2513 = vunpack.c.l.b16 %v2253
      %v2514 = vunpack.c.l.b16 %v2254
      %v2515 = vunpack.c.l.b16 %v2255
      %v2516 = vunpack.c.l.b16 %v2256
      %v2517 = vunpack.c.l.b16 %v2257
      %v2518 = vunpack.c.l.b16 %v2258
      %v2519 = vunpack.c.l.b16 %v2259
      %v2520 = vunpack.c.l.b16 %v2260
      %v2521 = vunpack.c.l.b16 %v2261
      %v2522 = vunpack.c.l.b16 %v2262
      %v2523 = vunpack.c.l.b16 %v2263
      %v2524 = vunpack.c.l.b16 %v2264
      %v2525 = vunpack.c.l.b16 %v2265
      %v2526 = vunpack.c.l.b16 %v2266
      %v2527 = vunpack.c.l.b16 %v2267
      %v2528 = vunpack.c.l.b16 %v2268
      %v2529 = vunpack.c.l.b16 %v2269
      %v2530 = vunpack.c.l.b16 %v2270
      %v2531 = vunpack.c.l.b16 %v2271
      %v2532 = vunpack.c.l.b16 %v2272
      %v2533 = vunpack.c.l.b16 %v2273
      %v2534 = vunpack.c.l.b16 %v2274
      %v2535 = vunpack.c.l.b16 %v2275
      %v2536 = vunpack.c.l.b16 %v2276
      %v2537 = vunpack.c.l.b16 %v2277
      %v2538 = vunpack.c.l.b16 %v2278
      %v2539 = vunpack.c.l.b16 %v2279
      %v2540 = vunpack.c.l.b16 %v2280
      %v2541 = vunpack.c.l.b16 %v2281
      %v2542 = vunpack.c.l.b16 %v2282
      %v2543 = vunpack.c.l.b16 %v2283
      %v2544 = vunpack.c.l.b16 %v2284
      %v2545 = vunpack.c.l.b16 %v2285
      %v2546 = vunpack.c.l.b16 %v2286
      %v2547 = vunpack.c.l.b16 %v2287
      %v2548 = vunpack.c.l.b16 %v2288
      %v2549 = vunpack.c.l.b16 %v2289
      %v2550 = vunpack.c.l.b16 %v2290
      %v2551 = vunpack.c.l.b16 %v2291
      %v2552 = vunpack.c.l.b16 %v2292
      %v2553 = vunpack.c.l.b16 %v2293
      %v2554 = vunpack.c.l.b16 %v2294
      %v2555 = vunpack.c.l.b16 %v2295
      %v2556 = vunpack.c.l.b16 %v2296
      %v2557 = vunpack.c.l.b16 %v2297
      %v2558 = vunpack.c.l.b16 %v2298
      %v2559 = vunpack.c.l.b16 %v2299
      %v2560 = vunpack.c.l.b16 %v2300
      %v2561 = vunpack.c.l.b16 %v2301
      %v2562 = vunpack.c.l.b16 %v2302
      %v2563 = vunpack.c.l.b16 %v2303
      %v2564 = vunpack.c.l.b16 %v2304
      %v2565 = vunpack.c.l.b16 %v2305
      %v2566 = vunpack.c.l.b16 %v2306
      %v2567 = vunpack.c.l.b16 %v2307
      %v2568 = vunpack.c.l.b16 %v2308
      %v2569 = vunpack.c.l.b16 %v2309
      %v2570 = vunpack.c.l.b16 %v2310
      %v2571 = vunpack.c.l.b16 %v2311
      %v2572 = vunpack.c.l.b16 %v2312
      %v2573 = vunpack.c.l.b16 %v2313
      %v2574 = vunpack.c.l.b16 %v2314
      %v2575 = vunpack.c.l.b16 %v2315
      %v2576 = vunpack.c.l.b16 %v2316
      %v2577 = vunpack.c.l.b16 %v2317
      %v2578 = vunpack.c.l.b16 %v2318
      %v2579 = vunpack.c.l.b16 %v2319
      %v2580 = vunpack.c.l.b16 %v2320
      %v2581 = vunpack.c.l.b16 %v2321
      %v2582 = vunpack.c.l.b16 %v2322
      %v2583 = vunpack.c.l.b16 %v2323
      %v2584 = vunpack.c.l.b16 %v2324
      %v2585 = vunpack.c.l.b16 %v2325
      %v2586 = vunpack.c.l.b16 %v2326
      %v2587 = vunpack.c.l.b16 %v2327
      %v2588 = vunpack.c.l.b16 %v2328
      %v2589 = vunpack.c.l.b16 %v2329
      %v2590 = vunpack.c.l.b16 %v2330
      %v2591 = vunpack.c.l.b16 %v2331
      %v2592 = vunpack.c.l.b16 %v2332
      %v2593 = vunpack.c.l.b16 %v2333
      %v2594 = vunpack.c.l.b16 %v2334
      %v2595 = vunpack.c.l.b16 %v2335
      %v2596 = vunpack.c.l.b16 %v2336
      %v2597 = vunpack.c.l.b16 %v2337
      %v2598 = vunpack.c.l.b16 %v2338
      %v2599 = vunpack.c.l.b16 %v2339
      %v2600 = vunpack.c.l.b16 %v2340
      %v2601 = vunpack.c.l.b16 %v2341
      %v2602 = vunpack.c.l.b16 %v2342
      %v2603 = vunpack.c.l.b16 %v2343
      %v2604 = vunpack.c.l.b16 %v2344
      %v2605 = vunpack.c.l.b16 %v2345
      %v2606 = vunpack.c.l.b16 %v2346
      %v2607 = vunpack.c.l.b16 %v2347
      %v2608 = vunpack.c.l.b16 %v2348
      %v2609 = vunpack.c.l.b16 %v2349
      %v2610 = vunpack.c.l.b16 %v2350
      %v2611 = vunpack.c.l.b16 %v2351
      %v2612 = vunpack.c.l.b16 %v2352
      %v2613 = vunpack.c.l.b16 %v2353
      %v2614 = vunpack.c.l.b16 %v2354
      %v2615 = vunpack.c.l.b16 %v2355
      %v2616 = vunpack.c.l.b16 %v2356
      %v2617 = vunpack.c.l.b16 %v2357
      %v2618 = vunpack.c.l.b16 %v2358
      %v2619 = vpack.c.b16 %v2492, %v2491
      %v2620 = vpack.c.b16 %v2494, %v2493
      %v2621 = vpack.c.b16 %v2496, %v2495
      %v2622 = vpack.c.b16 %v2498, %v2497
      %v2623 = vpack.c.b16 %v2500, %v2499
      %v2624 = vpack.c.b16 %v2502, %v2501
      %v2625 = vpack.c.b16 %v2504, %v2503
      %v2626 = vpack.c.b16 %v2506, %v2505
      %v2627 = vpack.c.b16 %v2508, %v2507
      %v2628 = vpack.c.b16 %v2510, %v2509
      %v2629 = vpack.c.b16 %v2512, %v2511
      %v2630 = vpack.c.b16 %v2514, %v2513
      %v2631 = vpack.c.b16 %v2516, %v2515
      %v2632 = vpack.c.b16 %v2518, %v2517
      %v2633 = vpack.c.b16 %v2520, %v2519
      %v2634 = vpack.c.b16 %v2522, %v2521
      %v2635 = vpack.c.b16 %v2524, %v2523
      %v2636 = vpack.c.b16 %v2526, %v2525
      %v2637 = vpack.c.b16 %v2528, %v2527
      %v2638 = vpack.c.b16 %v2530, %v2529
      %v2639 = vpack.c.b16 %v2532, %v2531
      %v2640 = vpack.c.b16 %v2534, %v2533
      %v2641 = vpack.c.b16 %v2536, %v2535
      %v2642 = vpack.c.b16 %v2538, %v2537
      %v2643 = vpack.c.b16 %v2540, %v2539
      %v2644 = vpack.c.b16 %v2542, %v2541
      %v2645 = vpack.c.b16 %v2544, %v2543
      %v2646 = vpack.c.b16 %v2546, %v2545
      %v2647 = vpack.c.b16 %v2548, %v2547
      %v2648 = vpack.c.b16 %v2550, %v2549
      %v2649 = vpack.c.b16 %v2552, %v2551
      %v2650 = vpack.c.b16 %v2554, %v2553
      %v2651 = vpack.c.b16 %v2556, %v2555
      %v2652 = vpack.c.b16 %v2558, %v2557
      %v2653 = vpack.c.b16 %v2560, %v2559
      %v2654 = vpack.c.b16 %v2562, %v2561
      %v2655 = vpack.c.b16 %v2564, %v2563
      %v2656 = vpack.c.b16 %v2566, %v2565
      %v2657 = vpack.c.b16 %v2568, %v2567
      %v2658 = vpack.c.b16 %v2570, %v2569
      %v2659 = vpack.c.b16 %v2572, %v2571
      %v2660 = vpack.c.b16 %v2574, %v2573
      %v2661 = vpack.c.b16 %v2576, %v2575
      %v2662 = vpack.c.b16 %v2578, %v2577
      %v2663 = vpack.c.b16 %v2580, %v2579
      %v2664 = vpack.c.b16 %v2582, %v2581
      %v2665 = vpack.c.b16 %v2584, %v2583
      %v2666 = vpack.c.b16 %v2586, %v2585
      %v2667 = vpack.c.b16 %v2588, %v2587
      %v2668 = vpack.c.b16 %v2590, %v2589
      %v2669 = vpack.c.b16 %v2592, %v2591
      %v2670 = vpack.c.b16 %v2594, %v2593
      %v2671 = vpack.c.b16 %v2596, %v2595
      %v2672 = vpack.c.b16 %v2598, %v2597
      %v2673 = vpack.c.b16 %v2600, %v2599
      %v2674 = vpack.c.b16 %v2602, %v2601
      %v2675 = vpack.c.b16 %v2604, %v2603
      %v2676 = vpack.c.b16 %v2606, %v2605
      %v2677 = vpack.c.b16 %v2608, %v2607
      %v2678 = vpack.c.b16 %v2610, %v2609
      %v2679 = vpack.c.b16 %v2612, %v2611
      %v2680 = vpack.c.b16 %v2614, %v2613
      %v2681 = vpack.c.b16 %v2616, %v2615
      %v2682 = vpack.c.b16 %v2618, %v2617
      %2747 = vmatpush.bf16.msra.mxu0 %v2626
      %2748 = vmatpush.bf16.msra.mxu0 %v2625
      %2749 = vmatpush.bf16.msra.mxu0 %v2624
      %2750 = vmatpush.bf16.msra.mxu0 %v2623
      %2751 = vmatpush.bf16.msra.mxu0 %v2622
      %2752 = vmatpush.bf16.msra.mxu0 %v2621
      %2753 = vmatpush.bf16.msra.mxu0 %v2620
      %2754 = vmatpush.bf16.msra.mxu0 %v2619
      %2755 = vmatmul.bf16.gmra.mxu0 %v2127
      %v2756 = vpop.f32.mrf.mxu0
      %v2757 = vadd.f32 %v2361, %v2756
      %v2758 = vpop.f32.mrf.mxu0
      %v2759 = vadd.f32 %v2361, %v2758
      %2760 = vmatmul.bf16.gmra.mxu0 %v2135
      %v2761 = vpop.f32.mrf.mxu0
      %v2762 = vadd.f32 %v2361, %v2761
      %v2763 = vpop.f32.mrf.mxu0
      %v2764 = vadd.f32 %v2361, %v2763
      %2765 = vmatmul.bf16.gmra.mxu0 %v2143
      %v2766 = vpop.f32.mrf.mxu0
      %v2767 = vadd.f32 %v2361, %v2766
      %v2768 = vpop.f32.mrf.mxu0
      %v2769 = vadd.f32 %v2361, %v2768
      %2770 = vmatmul.bf16.gmra.mxu0 %v2151
      %v2771 = vpop.f32.mrf.mxu0
      %v2772 = vadd.f32 %v2361, %v2771
      %v2773 = vpop.f32.mrf.mxu0
      %v2774 = vadd.f32 %v2361, %v2773
      %2775 = vmatmul.bf16.gmra.mxu0 %v2159
      %v2776 = vpop.f32.mrf.mxu0
      %v2777 = vadd.f32 %v2361, %v2776
      %v2778 = vpop.f32.mrf.mxu0
      %v2779 = vadd.f32 %v2361, %v2778
      %2780 = vmatmul.bf16.gmra.mxu0 %v2167
      %v2781 = vpop.f32.mrf.mxu0
      %v2782 = vadd.f32 %v2361, %v2781
      %v2783 = vpop.f32.mrf.mxu0
      %v2784 = vadd.f32 %v2361, %v2783
      %2785 = vmatmul.bf16.gmra.mxu0 %v2175
      %v2786 = vpop.f32.mrf.mxu0
      %v2787 = vadd.f32 %v2361, %v2786
      %v2788 = vpop.f32.mrf.mxu0
      %v2789 = vadd.f32 %v2361, %v2788
      %2790 = vmatmul.bf16.gmra.mxu0 %v2183
      %v2791 = vpop.f32.mrf.mxu0
      %v2792 = vadd.f32 %v2361, %v2791
      %v2793 = vpop.f32.mrf.mxu0
      %v2794 = vadd.f32 %v2361, %v2793
      %2795 = vmatmul.bf16.gmra.mxu0 %v2191
      %v2796 = vpop.f32.mrf.mxu0
      %v2797 = vadd.f32 %v2361, %v2796
      %v2798 = vpop.f32.mrf.mxu0
      %v2799 = vadd.f32 %v2361, %v2798
      %2800 = vmatmul.bf16.gmra.mxu0 %v2199
      %v2801 = vpop.f32.mrf.mxu0
      %v2802 = vadd.f32 %v2361, %v2801
      %v2803 = vpop.f32.mrf.mxu0
      %v2804 = vadd.f32 %v2361, %v2803
      %2805 = vmatmul.bf16.gmra.mxu0 %v2207
      %v2806 = vpop.f32.mrf.mxu0
      %v2807 = vadd.f32 %v2361, %v2806
      %v2808 = vpop.f32.mrf.mxu0
      %v2809 = vadd.f32 %v2361, %v2808
      %2810 = vmatmul.bf16.gmra.mxu0 %v2215
      %v2811 = vpop.f32.mrf.mxu0
      %v2812 = vadd.f32 %v2361, %v2811
      %v2813 = vpop.f32.mrf.mxu0
      %v2814 = vadd.f32 %v2361, %v2813
      %2815 = vmatmul.bf16.gmra.mxu0 %v2223
      %v2816 = vpop.f32.mrf.mxu0
      %v2817 = vadd.f32 %v2361, %v2816
      %v2818 = vpop.f32.mrf.mxu0
      %2819 = vdwg.mxu0
      %2820 = vmatpush.bf16.msra.mxu0 %v2634
      %2821 = vmatpush.bf16.msra.mxu0 %v2633
      %2822 = vmatpush.bf16.msra.mxu0 %v2632
      %2823 = vmatpush.bf16.msra.mxu0 %v2631
      %2824 = vmatpush.bf16.msra.mxu0 %v2630
      %2825 = vmatpush.bf16.msra.mxu0 %v2629
      %2826 = vmatpush.bf16.msra.mxu0 %v2628
      %2827 = vmatpush.bf16.msra.mxu0 %v2627
      %2828 = vmatmul.bf16.gmra.mxu0 %v2128
      %v2829 = vpop.f32.mrf.mxu0
      %v2830 = vadd.f32 %v2757, %v2829
      %v2831 = vpop.f32.mrf.mxu0
      %v2832 = vadd.f32 %v2759, %v2831
      %2833 = vmatmul.bf16.gmra.mxu0 %v2136
      %v2834 = vpop.f32.mrf.mxu0
      %v2835 = vadd.f32 %v2762, %v2834
      %v2836 = vpop.f32.mrf.mxu0
      %v2837 = vadd.f32 %v2764, %v2836
      %2838 = vmatmul.bf16.gmra.mxu0 %v2144
      %v2839 = vpop.f32.mrf.mxu0
      %v2840 = vadd.f32 %v2767, %v2839
      %v2841 = vpop.f32.mrf.mxu0
      %v2842 = vadd.f32 %v2769, %v2841
      %2843 = vmatmul.bf16.gmra.mxu0 %v2152
      %v2844 = vpop.f32.mrf.mxu0
      %v2845 = vadd.f32 %v2772, %v2844
      %v2846 = vpop.f32.mrf.mxu0
      %v2847 = vadd.f32 %v2774, %v2846
      %2848 = vmatmul.bf16.gmra.mxu0 %v2160
      %v2849 = vpop.f32.mrf.mxu0
      %v2850 = vadd.f32 %v2777, %v2849
      %v2851 = vpop.f32.mrf.mxu0
      %v2852 = vadd.f32 %v2779, %v2851
      %2853 = vmatmul.bf16.gmra.mxu0 %v2168
      %v2854 = vpop.f32.mrf.mxu0
      %v2855 = vadd.f32 %v2782, %v2854
      %v2856 = vpop.f32.mrf.mxu0
      %v2857 = vadd.f32 %v2784, %v2856
      %2858 = vmatmul.bf16.gmra.mxu0 %v2176
      %v2859 = vpop.f32.mrf.mxu0
      %v2860 = vadd.f32 %v2787, %v2859
      %v2861 = vpop.f32.mrf.mxu0
      %v2862 = vadd.f32 %v2789, %v2861
      %2863 = vmatmul.bf16.gmra.mxu0 %v2184
      %v2864 = vpop.f32.mrf.mxu0
      %v2865 = vadd.f32 %v2792, %v2864
      %v2866 = vpop.f32.mrf.mxu0
      %v2867 = vadd.f32 %v2794, %v2866
      %2868 = vmatmul.bf16.gmra.mxu0 %v2192
      %v2869 = vpop.f32.mrf.mxu0
      %v2870 = vadd.f32 %v2797, %v2869
      %v2871 = vpop.f32.mrf.mxu0
      %v2872 = vadd.f32 %v2799, %v2871
      %2873 = vmatmul.bf16.gmra.mxu0 %v2200
      %v2874 = vpop.f32.mrf.mxu0
      %v2875 = vadd.f32 %v2802, %v2874
      %v2876 = vpop.f32.mrf.mxu0
      %v2877 = vadd.f32 %v2804, %v2876
      %2878 = vmatmul.bf16.gmra.mxu0 %v2208
      %v2879 = vpop.f32.mrf.mxu0
      %v2880 = vadd.f32 %v2807, %v2879
      %v2881 = vpop.f32.mrf.mxu0
      %v2882 = vadd.f32 %v2809, %v2881
      %2883 = vmatmul.bf16.gmra.mxu0 %v2216
      %v2884 = vpop.f32.mrf.mxu0
      %v2885 = vadd.f32 %v2812, %v2884
      %v2886 = vpop.f32.mrf.mxu0
      %v2887 = vadd.f32 %v2814, %v2886
      %2888 = vmatmul.bf16.gmra.mxu0 %v2224
      %v2889 = vpop.f32.mrf.mxu0
      %v2890 = vadd.f32 %v2817, %v2889
      %v2891 = vpop.f32.mrf.mxu0
      %2892 = vdwg.mxu0
      %2893 = vmatpush.bf16.msra.mxu0 %v2642
      %2894 = vmatpush.bf16.msra.mxu0 %v2641
      %2895 = vmatpush.bf16.msra.mxu0 %v2640
      %2896 = vmatpush.bf16.msra.mxu0 %v2639
      %2897 = vmatpush.bf16.msra.mxu0 %v2638
      %2898 = vmatpush.bf16.msra.mxu0 %v2637
      %2899 = vmatpush.bf16.msra.mxu0 %v2636
      %2900 = vmatpush.bf16.msra.mxu0 %v2635
      %2901 = vmatmul.bf16.gmra.mxu0 %v2129
      %v2902 = vpop.f32.mrf.mxu0
      %v2903 = vadd.f32 %v2830, %v2902
      %v2904 = vpop.f32.mrf.mxu0
      %v2905 = vadd.f32 %v2832, %v2904
      %2906 = vmatmul.bf16.gmra.mxu0 %v2137
      %v2907 = vpop.f32.mrf.mxu0
      %v2908 = vadd.f32 %v2835, %v2907
      %v2909 = vpop.f32.mrf.mxu0
      %v2910 = vadd.f32 %v2837, %v2909
      %2911 = vmatmul.bf16.gmra.mxu0 %v2145
      %v2912 = vpop.f32.mrf.mxu0
      %v2913 = vadd.f32 %v2840, %v2912
      %v2914 = vpop.f32.mrf.mxu0
      %v2915 = vadd.f32 %v2842, %v2914
      %2916 = vmatmul.bf16.gmra.mxu0 %v2153
      %v2917 = vpop.f32.mrf.mxu0
      %v2918 = vadd.f32 %v2845, %v2917
      %v2919 = vpop.f32.mrf.mxu0
      %v2920 = vadd.f32 %v2847, %v2919
      %2921 = vmatmul.bf16.gmra.mxu0 %v2161
      %v2922 = vpop.f32.mrf.mxu0
      %v2923 = vadd.f32 %v2850, %v2922
      %v2924 = vpop.f32.mrf.mxu0
      %v2925 = vadd.f32 %v2852, %v2924
      %2926 = vmatmul.bf16.gmra.mxu0 %v2169
      %v2927 = vpop.f32.mrf.mxu0
      %v2928 = vadd.f32 %v2855, %v2927
      %v2929 = vpop.f32.mrf.mxu0
      %v2930 = vadd.f32 %v2857, %v2929
      %2931 = vmatmul.bf16.gmra.mxu0 %v2177
      %v2932 = vpop.f32.mrf.mxu0
      %v2933 = vadd.f32 %v2860, %v2932
      %v2934 = vpop.f32.mrf.mxu0
      %v2935 = vadd.f32 %v2862, %v2934
      %2936 = vmatmul.bf16.gmra.mxu0 %v2185
      %v2937 = vpop.f32.mrf.mxu0
      %v2938 = vadd.f32 %v2865, %v2937
      %v2939 = vpop.f32.mrf.mxu0
      %v2940 = vadd.f32 %v2867, %v2939
      %2941 = vmatmul.bf16.gmra.mxu0 %v2193
      %v2942 = vpop.f32.mrf.mxu0
      %v2943 = vadd.f32 %v2870, %v2942
      %v2944 = vpop.f32.mrf.mxu0
      %v2945 = vadd.f32 %v2872, %v2944
      %2946 = vmatmul.bf16.gmra.mxu0 %v2201
      %v2947 = vpop.f32.mrf.mxu0
      %v2948 = vadd.f32 %v2875, %v2947
      %v2949 = vpop.f32.mrf.mxu0
      %v2950 = vadd.f32 %v2877, %v2949
      %2951 = vmatmul.bf16.gmra.mxu0 %v2209
      %v2952 = vpop.f32.mrf.mxu0
      %v2953 = vadd.f32 %v2880, %v2952
      %v2954 = vpop.f32.mrf.mxu0
      %v2955 = vadd.f32 %v2882, %v2954
      %2956 = vmatmul.bf16.gmra.mxu0 %v2217
      %v2957 = vpop.f32.mrf.mxu0
      %v2958 = vadd.f32 %v2885, %v2957
      %v2959 = vpop.f32.mrf.mxu0
      %v2960 = vadd.f32 %v2887, %v2959
      %2961 = vmatmul.bf16.gmra.mxu0 %v2225
      %v2962 = vpop.f32.mrf.mxu0
      %v2963 = vadd.f32 %v2890, %v2962
      %v2964 = vpop.f32.mrf.mxu0
      %2965 = vdwg.mxu0
      %2966 = vmatpush.bf16.msra.mxu0 %v2650
      %2967 = vmatpush.bf16.msra.mxu0 %v2649
      %2968 = vmatpush.bf16.msra.mxu0 %v2648
      %2969 = vmatpush.bf16.msra.mxu0 %v2647
      %2970 = vmatpush.bf16.msra.mxu0 %v2646
      %2971 = vmatpush.bf16.msra.mxu0 %v2645
      %2972 = vmatpush.bf16.msra.mxu0 %v2644
      %2973 = vmatpush.bf16.msra.mxu0 %v2643
      %2974 = vmatmul.bf16.gmra.mxu0 %v2130
      %v2975 = vpop.f32.mrf.mxu0
      %v2976 = vadd.f32 %v2903, %v2975
      %v2977 = vpop.f32.mrf.mxu0
      %v2978 = vadd.f32 %v2905, %v2977
      %2979 = vmatmul.bf16.gmra.mxu0 %v2138
      %v2980 = vpop.f32.mrf.mxu0
      %v2981 = vadd.f32 %v2908, %v2980
      %v2982 = vpop.f32.mrf.mxu0
      %v2983 = vadd.f32 %v2910, %v2982
      %2984 = vmatmul.bf16.gmra.mxu0 %v2146
      %v2985 = vpop.f32.mrf.mxu0
      %v2986 = vadd.f32 %v2913, %v2985
      %v2987 = vpop.f32.mrf.mxu0
      %v2988 = vadd.f32 %v2915, %v2987
      %2989 = vmatmul.bf16.gmra.mxu0 %v2154
      %v2990 = vpop.f32.mrf.mxu0
      %v2991 = vadd.f32 %v2918, %v2990
      %v2992 = vpop.f32.mrf.mxu0
      %v2993 = vadd.f32 %v2920, %v2992
      %2994 = vmatmul.bf16.gmra.mxu0 %v2162
      %v2995 = vpop.f32.mrf.mxu0
      %v2996 = vadd.f32 %v2923, %v2995
      %v2997 = vpop.f32.mrf.mxu0
      %v2998 = vadd.f32 %v2925, %v2997
      %2999 = vmatmul.bf16.gmra.mxu0 %v2170
      %v3000 = vpop.f32.mrf.mxu0
      %v3001 = vadd.f32 %v2928, %v3000
      %v3002 = vpop.f32.mrf.mxu0
      %v3003 = vadd.f32 %v2930, %v3002
      %3004 = vmatmul.bf16.gmra.mxu0 %v2178
      %v3005 = vpop.f32.mrf.mxu0
      %v3006 = vadd.f32 %v2933, %v3005
      %v3007 = vpop.f32.mrf.mxu0
      %v3008 = vadd.f32 %v2935, %v3007
      %3009 = vmatmul.bf16.gmra.mxu0 %v2186
      %v3010 = vpop.f32.mrf.mxu0
      %v3011 = vadd.f32 %v2938, %v3010
      %v3012 = vpop.f32.mrf.mxu0
      %v3013 = vadd.f32 %v2940, %v3012
      %3014 = vmatmul.bf16.gmra.mxu0 %v2194
      %v3015 = vpop.f32.mrf.mxu0
      %v3016 = vadd.f32 %v2943, %v3015
      %v3017 = vpop.f32.mrf.mxu0
      %v3018 = vadd.f32 %v2945, %v3017
      %3019 = vmatmul.bf16.gmra.mxu0 %v2202
      %v3020 = vpop.f32.mrf.mxu0
      %v3021 = vadd.f32 %v2948, %v3020
      %v3022 = vpop.f32.mrf.mxu0
      %v3023 = vadd.f32 %v2950, %v3022
      %3024 = vmatmul.bf16.gmra.mxu0 %v2210
      %v3025 = vpop.f32.mrf.mxu0
      %v3026 = vadd.f32 %v2953, %v3025
      %v3027 = vpop.f32.mrf.mxu0
      %v3028 = vadd.f32 %v2955, %v3027
      %3029 = vmatmul.bf16.gmra.mxu0 %v2218
      %v3030 = vpop.f32.mrf.mxu0
      %v3031 = vadd.f32 %v2958, %v3030
      %v3032 = vpop.f32.mrf.mxu0
      %v3033 = vadd.f32 %v2960, %v3032
      %3034 = vmatmul.bf16.gmra.mxu0 %v2226
      %v3035 = vpop.f32.mrf.mxu0
      %v3036 = vadd.f32 %v2963, %v3035
      %v3037 = vpop.f32.mrf.mxu0
      %3038 = vdwg.mxu0
      %3039 = vmatpush.bf16.msra.mxu0 %v2658
      %3040 = vmatpush.bf16.msra.mxu0 %v2657
      %3041 = vmatpush.bf16.msra.mxu0 %v2656
      %3042 = vmatpush.bf16.msra.mxu0 %v2655
      %3043 = vmatpush.bf16.msra.mxu0 %v2654
      %3044 = vmatpush.bf16.msra.mxu0 %v2653
      %3045 = vmatpush.bf16.msra.mxu0 %v2652
      %3046 = vmatpush.bf16.msra.mxu0 %v2651
      %3047 = vmatmul.bf16.gmra.mxu0 %v2131
      %v3048 = vpop.f32.mrf.mxu0
      %v3049 = vadd.f32 %v2976, %v3048
      %v3050 = vpop.f32.mrf.mxu0
      %v3051 = vadd.f32 %v2978, %v3050
      %3052 = vmatmul.bf16.gmra.mxu0 %v2139
      %v3053 = vpop.f32.mrf.mxu0
      %v3054 = vadd.f32 %v2981, %v3053
      %v3055 = vpop.f32.mrf.mxu0
      %v3056 = vadd.f32 %v2983, %v3055
      %3057 = vmatmul.bf16.gmra.mxu0 %v2147
      %v3058 = vpop.f32.mrf.mxu0
      %v3059 = vadd.f32 %v2986, %v3058
      %v3060 = vpop.f32.mrf.mxu0
      %v3061 = vadd.f32 %v2988, %v3060
      %3062 = vmatmul.bf16.gmra.mxu0 %v2155
      %v3063 = vpop.f32.mrf.mxu0
      %v3064 = vadd.f32 %v2991, %v3063
      %v3065 = vpop.f32.mrf.mxu0
      %v3066 = vadd.f32 %v2993, %v3065
      %3067 = vmatmul.bf16.gmra.mxu0 %v2163
      %v3068 = vpop.f32.mrf.mxu0
      %v3069 = vadd.f32 %v2996, %v3068
      %v3070 = vpop.f32.mrf.mxu0
      %v3071 = vadd.f32 %v2998, %v3070
      %3072 = vmatmul.bf16.gmra.mxu0 %v2171
      %v3073 = vpop.f32.mrf.mxu0
      %v3074 = vadd.f32 %v3001, %v3073
      %v3075 = vpop.f32.mrf.mxu0
      %v3076 = vadd.f32 %v3003, %v3075
      %3077 = vmatmul.bf16.gmra.mxu0 %v2179
      %v3078 = vpop.f32.mrf.mxu0
      %v3079 = vadd.f32 %v3006, %v3078
      %v3080 = vpop.f32.mrf.mxu0
      %v3081 = vadd.f32 %v3008, %v3080
      %3082 = vmatmul.bf16.gmra.mxu0 %v2187
      %v3083 = vpop.f32.mrf.mxu0
      %v3084 = vadd.f32 %v3011, %v3083
      %v3085 = vpop.f32.mrf.mxu0
      %v3086 = vadd.f32 %v3013, %v3085
      %3087 = vmatmul.bf16.gmra.mxu0 %v2195
      %v3088 = vpop.f32.mrf.mxu0
      %v3089 = vadd.f32 %v3016, %v3088
      %v3090 = vpop.f32.mrf.mxu0
      %v3091 = vadd.f32 %v3018, %v3090
      %3092 = vmatmul.bf16.gmra.mxu0 %v2203
      %v3093 = vpop.f32.mrf.mxu0
      %v3094 = vadd.f32 %v3021, %v3093
      %v3095 = vpop.f32.mrf.mxu0
      %v3096 = vadd.f32 %v3023, %v3095
      %3097 = vmatmul.bf16.gmra.mxu0 %v2211
      %v3098 = vpop.f32.mrf.mxu0
      %v3099 = vadd.f32 %v3026, %v3098
      %v3100 = vpop.f32.mrf.mxu0
      %v3101 = vadd.f32 %v3028, %v3100
      %3102 = vmatmul.bf16.gmra.mxu0 %v2219
      %v3103 = vpop.f32.mrf.mxu0
      %v3104 = vadd.f32 %v3031, %v3103
      %v3105 = vpop.f32.mrf.mxu0
      %v3106 = vadd.f32 %v3033, %v3105
      %3107 = vmatmul.bf16.gmra.mxu0 %v2227
      %v3108 = vpop.f32.mrf.mxu0
      %v3109 = vadd.f32 %v3036, %v3108
      %v3110 = vpop.f32.mrf.mxu0
      %3111 = vdwg.mxu0
      %3112 = vmatpush.bf16.msra.mxu0 %v2666
      %3113 = vmatpush.bf16.msra.mxu0 %v2665
      %3114 = vmatpush.bf16.msra.mxu0 %v2664
      %3115 = vmatpush.bf16.msra.mxu0 %v2663
      %3116 = vmatpush.bf16.msra.mxu0 %v2662
      %3117 = vmatpush.bf16.msra.mxu0 %v2661
      %3118 = vmatpush.bf16.msra.mxu0 %v2660
      %3119 = vmatpush.bf16.msra.mxu0 %v2659
      %3120 = vmatmul.bf16.gmra.mxu0 %v2132
      %v3121 = vpop.f32.mrf.mxu0
      %v3122 = vadd.f32 %v3049, %v3121
      %v3123 = vpop.f32.mrf.mxu0
      %v3124 = vadd.f32 %v3051, %v3123
      %3125 = vmatmul.bf16.gmra.mxu0 %v2140
      %v3126 = vpop.f32.mrf.mxu0
      %v3127 = vadd.f32 %v3054, %v3126
      %v3128 = vpop.f32.mrf.mxu0
      %v3129 = vadd.f32 %v3056, %v3128
      %3130 = vmatmul.bf16.gmra.mxu0 %v2148
      %v3131 = vpop.f32.mrf.mxu0
      %v3132 = vadd.f32 %v3059, %v3131
      %v3133 = vpop.f32.mrf.mxu0
      %v3134 = vadd.f32 %v3061, %v3133
      %3135 = vmatmul.bf16.gmra.mxu0 %v2156
      %v3136 = vpop.f32.mrf.mxu0
      %v3137 = vadd.f32 %v3064, %v3136
      %v3138 = vpop.f32.mrf.mxu0
      %v3139 = vadd.f32 %v3066, %v3138
      %3140 = vmatmul.bf16.gmra.mxu0 %v2164
      %v3141 = vpop.f32.mrf.mxu0
      %v3142 = vadd.f32 %v3069, %v3141
      %v3143 = vpop.f32.mrf.mxu0
      %v3144 = vadd.f32 %v3071, %v3143
      %3145 = vmatmul.bf16.gmra.mxu0 %v2172
      %v3146 = vpop.f32.mrf.mxu0
      %v3147 = vadd.f32 %v3074, %v3146
      %v3148 = vpop.f32.mrf.mxu0
      %v3149 = vadd.f32 %v3076, %v3148
      %3150 = vmatmul.bf16.gmra.mxu0 %v2180
      %v3151 = vpop.f32.mrf.mxu0
      %v3152 = vadd.f32 %v3079, %v3151
      %v3153 = vpop.f32.mrf.mxu0
      %v3154 = vadd.f32 %v3081, %v3153
      %3155 = vmatmul.bf16.gmra.mxu0 %v2188
      %v3156 = vpop.f32.mrf.mxu0
      %v3157 = vadd.f32 %v3084, %v3156
      %v3158 = vpop.f32.mrf.mxu0
      %v3159 = vadd.f32 %v3086, %v3158
      %3160 = vmatmul.bf16.gmra.mxu0 %v2196
      %v3161 = vpop.f32.mrf.mxu0
      %v3162 = vadd.f32 %v3089, %v3161
      %v3163 = vpop.f32.mrf.mxu0
      %v3164 = vadd.f32 %v3091, %v3163
      %3165 = vmatmul.bf16.gmra.mxu0 %v2204
      %v3166 = vpop.f32.mrf.mxu0
      %v3167 = vadd.f32 %v3094, %v3166
      %v3168 = vpop.f32.mrf.mxu0
      %v3169 = vadd.f32 %v3096, %v3168
      %3170 = vmatmul.bf16.gmra.mxu0 %v2212
      %v3171 = vpop.f32.mrf.mxu0
      %v3172 = vadd.f32 %v3099, %v3171
      %v3173 = vpop.f32.mrf.mxu0
      %v3174 = vadd.f32 %v3101, %v3173
      %3175 = vmatmul.bf16.gmra.mxu0 %v2220
      %v3176 = vpop.f32.mrf.mxu0
      %v3177 = vadd.f32 %v3104, %v3176
      %v3178 = vpop.f32.mrf.mxu0
      %v3179 = vadd.f32 %v3106, %v3178
      %3180 = vmatmul.bf16.gmra.mxu0 %v2228
      %v3181 = vpop.f32.mrf.mxu0
      %v3182 = vadd.f32 %v3109, %v3181
      %v3183 = vpop.f32.mrf.mxu0
      %3184 = vdwg.mxu0
      %3185 = vmatpush.bf16.msra.mxu0 %v2674
      %3186 = vmatpush.bf16.msra.mxu0 %v2673
      %3187 = vmatpush.bf16.msra.mxu0 %v2672
      %3188 = vmatpush.bf16.msra.mxu0 %v2671
      %3189 = vmatpush.bf16.msra.mxu0 %v2670
      %3190 = vmatpush.bf16.msra.mxu0 %v2669
      %3191 = vmatpush.bf16.msra.mxu0 %v2668
      %3192 = vmatpush.bf16.msra.mxu0 %v2667
      %3193 = vmatmul.bf16.gmra.mxu0 %v2133
      %v3194 = vpop.f32.mrf.mxu0
      %v3195 = vadd.f32 %v3122, %v3194
      %v3196 = vpop.f32.mrf.mxu0
      %v3197 = vadd.f32 %v3124, %v3196
      %3198 = vmatmul.bf16.gmra.mxu0 %v2141
      %v3199 = vpop.f32.mrf.mxu0
      %v3200 = vadd.f32 %v3127, %v3199
      %v3201 = vpop.f32.mrf.mxu0
      %v3202 = vadd.f32 %v3129, %v3201
      %3203 = vmatmul.bf16.gmra.mxu0 %v2149
      %v3204 = vpop.f32.mrf.mxu0
      %v3205 = vadd.f32 %v3132, %v3204
      %v3206 = vpop.f32.mrf.mxu0
      %v3207 = vadd.f32 %v3134, %v3206
      %3208 = vmatmul.bf16.gmra.mxu0 %v2157
      %v3209 = vpop.f32.mrf.mxu0
      %v3210 = vadd.f32 %v3137, %v3209
      %v3211 = vpop.f32.mrf.mxu0
      %v3212 = vadd.f32 %v3139, %v3211
      %3213 = vmatmul.bf16.gmra.mxu0 %v2165
      %v3214 = vpop.f32.mrf.mxu0
      %v3215 = vadd.f32 %v3142, %v3214
      %v3216 = vpop.f32.mrf.mxu0
      %v3217 = vadd.f32 %v3144, %v3216
      %3218 = vmatmul.bf16.gmra.mxu0 %v2173
      %v3219 = vpop.f32.mrf.mxu0
      %v3220 = vadd.f32 %v3147, %v3219
      %v3221 = vpop.f32.mrf.mxu0
      %v3222 = vadd.f32 %v3149, %v3221
      %3223 = vmatmul.bf16.gmra.mxu0 %v2181
      %v3224 = vpop.f32.mrf.mxu0
      %v3225 = vadd.f32 %v3152, %v3224
      %v3226 = vpop.f32.mrf.mxu0
      %v3227 = vadd.f32 %v3154, %v3226
      %3228 = vmatmul.bf16.gmra.mxu0 %v2189
      %v3229 = vpop.f32.mrf.mxu0
      %v3230 = vadd.f32 %v3157, %v3229
      %v3231 = vpop.f32.mrf.mxu0
      %v3232 = vadd.f32 %v3159, %v3231
      %3233 = vmatmul.bf16.gmra.mxu0 %v2197
      %v3234 = vpop.f32.mrf.mxu0
      %v3235 = vadd.f32 %v3162, %v3234
      %v3236 = vpop.f32.mrf.mxu0
      %v3237 = vadd.f32 %v3164, %v3236
      %3238 = vmatmul.bf16.gmra.mxu0 %v2205
      %v3239 = vpop.f32.mrf.mxu0
      %v3240 = vadd.f32 %v3167, %v3239
      %v3241 = vpop.f32.mrf.mxu0
      %v3242 = vadd.f32 %v3169, %v3241
      %3243 = vmatmul.bf16.gmra.mxu0 %v2213
      %v3244 = vpop.f32.mrf.mxu0
      %v3245 = vadd.f32 %v3172, %v3244
      %v3246 = vpop.f32.mrf.mxu0
      %v3247 = vadd.f32 %v3174, %v3246
      %3248 = vmatmul.bf16.gmra.mxu0 %v2221
      %v3249 = vpop.f32.mrf.mxu0
      %v3250 = vadd.f32 %v3177, %v3249
      %v3251 = vpop.f32.mrf.mxu0
      %v3252 = vadd.f32 %v3179, %v3251
      %3253 = vmatmul.bf16.gmra.mxu0 %v2229
      %v3254 = vpop.f32.mrf.mxu0
      %v3255 = vadd.f32 %v3182, %v3254
      %v3256 = vpop.f32.mrf.mxu0
      %3257 = vdwg.mxu0
      %3258 = vmatpush.bf16.msra.mxu0 %v2682
      %3259 = vmatpush.bf16.msra.mxu0 %v2681
      %3260 = vmatpush.bf16.msra.mxu0 %v2680
      %3261 = vmatpush.bf16.msra.mxu0 %v2679
      %3262 = vmatpush.bf16.msra.mxu0 %v2678
      %3263 = vmatpush.bf16.msra.mxu0 %v2677
      %3264 = vmatpush.bf16.msra.mxu0 %v2676
      %3265 = vmatpush.bf16.msra.mxu0 %v2675
      %3266 = vmatmul.bf16.gmra.mxu0 %v2134
      %v3267 = vpop.f32.mrf.mxu0
      %v3268 = vadd.f32 %v3195, %v3267
      %v3269 = vpop.f32.mrf.mxu0
      %v3270 = vadd.f32 %v3197, %v3269
      %3271 = vmatmul.bf16.gmra.mxu0 %v2142
      %v3272 = vpop.f32.mrf.mxu0
      %v3273 = vadd.f32 %v3200, %v3272
      %v3274 = vpop.f32.mrf.mxu0
      %v3275 = vadd.f32 %v3202, %v3274
      %3276 = vmatmul.bf16.gmra.mxu0 %v2150
      %v3277 = vpop.f32.mrf.mxu0
      %v3278 = vadd.f32 %v3205, %v3277
      %v3279 = vpop.f32.mrf.mxu0
      %v3280 = vadd.f32 %v3207, %v3279
      %3281 = vmatmul.bf16.gmra.mxu0 %v2158
      %v3282 = vpop.f32.mrf.mxu0
      %v3283 = vadd.f32 %v3210, %v3282
      %v3284 = vpop.f32.mrf.mxu0
      %v3285 = vadd.f32 %v3212, %v3284
      %3286 = vmatmul.bf16.gmra.mxu0 %v2166
      %v3287 = vpop.f32.mrf.mxu0
      %v3288 = vadd.f32 %v3215, %v3287
      %v3289 = vpop.f32.mrf.mxu0
      %v3290 = vadd.f32 %v3217, %v3289
      %3291 = vmatmul.bf16.gmra.mxu0 %v2174
      %v3292 = vpop.f32.mrf.mxu0
      %v3293 = vadd.f32 %v3220, %v3292
      %v3294 = vpop.f32.mrf.mxu0
      %v3295 = vadd.f32 %v3222, %v3294
      %3296 = vmatmul.bf16.gmra.mxu0 %v2182
      %v3297 = vpop.f32.mrf.mxu0
      %v3298 = vadd.f32 %v3225, %v3297
      %v3299 = vpop.f32.mrf.mxu0
      %v3300 = vadd.f32 %v3227, %v3299
      %3301 = vmatmul.bf16.gmra.mxu0 %v2190
      %v3302 = vpop.f32.mrf.mxu0
      %v3303 = vadd.f32 %v3230, %v3302
      %v3304 = vpop.f32.mrf.mxu0
      %v3305 = vadd.f32 %v3232, %v3304
      %3306 = vmatmul.bf16.gmra.mxu0 %v2198
      %v3307 = vpop.f32.mrf.mxu0
      %v3308 = vadd.f32 %v3235, %v3307
      %v3309 = vpop.f32.mrf.mxu0
      %v3310 = vadd.f32 %v3237, %v3309
      %3311 = vmatmul.bf16.gmra.mxu0 %v2206
      %v3312 = vpop.f32.mrf.mxu0
      %v3313 = vadd.f32 %v3240, %v3312
      %v3314 = vpop.f32.mrf.mxu0
      %v3315 = vadd.f32 %v3242, %v3314
      %3316 = vmatmul.bf16.gmra.mxu0 %v2214
      %v3317 = vpop.f32.mrf.mxu0
      %v3318 = vadd.f32 %v3245, %v3317
      %v3319 = vpop.f32.mrf.mxu0
      %v3320 = vadd.f32 %v3247, %v3319
      %3321 = vmatmul.bf16.gmra.mxu0 %v2222
      %v3322 = vpop.f32.mrf.mxu0
      %v3323 = vadd.f32 %v3250, %v3322
      %v3324 = vpop.f32.mrf.mxu0
      %v3325 = vadd.f32 %v3252, %v3324
      %3326 = vmatmul.bf16.gmra.mxu0 %v2230
      %v3327 = vpop.f32.mrf.mxu0
      %v3328 = vadd.f32 %v3255, %v3327
      %v3329 = vpop.f32.mrf.mxu0
      %3330 = vdwg.mxu0
      %3331 = vst [vmem:[%s352] sm:$0xff] %v3268
      %3332 = vst [vmem:[%s352 + $0x8] sm:$0xff] %v3270
      %3333 = vst [vmem:[%s352 + $0x10] sm:$0xff] %v3273
      %3334 = vst [vmem:[%s352 + $0x18] sm:$0xff] %v3275
      %3335 = vst [vmem:[%s352 + $0x20] sm:$0xff] %v3278
      %3336 = vst [vmem:[%s352 + $0x28] sm:$0xff] %v3280
      %3337 = vst [vmem:[%s352 + $0x30] sm:$0xff] %v3283
      %3338 = vst [vmem:[%s352 + $0x38] sm:$0xff] %v3285
      %3339 = vst [vmem:[%s352 + $0x40] sm:$0xff] %v3288
      %3340 = vst [vmem:[%s352 + $0x48] sm:$0xff] %v3290
      %3341 = vst [vmem:[%s352 + $0x50] sm:$0xff] %v3293
      %3342 = vst [vmem:[%s352 + $0x58] sm:$0xff] %v3295
      %3343 = vst [vmem:[%s352 + $0x60] sm:$0xff] %v3298
      %3344 = vst [vmem:[%s352 + $0x68] sm:$0xff] %v3300
      %3345 = vst [vmem:[%s352 + $0x70] sm:$0xff] %v3303
      %3346 = vst [vmem:[%s352 + $0x78] sm:$0xff] %v3305
      %3347 = vst [vmem:[%s352 + $0x80] sm:$0xff] %v3308
      %3348 = vst [vmem:[%s352 + $0x88] sm:$0xff] %v3310
      %3349 = vst [vmem:[%s352 + $0x90] sm:$0xff] %v3313
      %3350 = vst [vmem:[%s352 + $0x98] sm:$0xff] %v3315
      %3351 = vst [vmem:[%s352 + $0xa0] sm:$0xff] %v3318
      %3352 = vst [vmem:[%s352 + $0xa8] sm:$0xff] %v3320
      %3353 = vst [vmem:[%s352 + $0xb0] sm:$0xff] %v3323
      %3354 = vst [vmem:[%s352 + $0xb8] sm:$0xff] %v3325
      %3355 = vst [vmem:[%s352 + $0xc0] sm:$0x3f] %v3328
      %p3356 = scmp.lt.s32.totalorder %s20, 1
      %s3357 = scalar_select %p3356, %s20, 1
      %s3358 = smul.addr %s3357, 25
      %s3359 = smul.addr %s3358, 8
      %s3360 = scalar_lea.vmem %s9, %s3359
      // Predicated region
      $region57: #{_lambda_.1} parent=55 // pred_check
        %p3361 = pneg %p237
      $region58: #{_lambda_.1} parent=55 // pred_check_branch
        %3363 = sbr.rel (%p3361) target = $region60
      $region59: #{_lambda_.1} parent=55 // pred_region
        _
      $region60: #{_lambda_.1} parent=55 // pred_fallthru
        _
    $region56: #{_lambda_.1} parent=5 // pred_fallthru
      _
    %p3364 = scmp.le.s32.totalorder 2, %s15
    // Predicated region
    $region61: #{_lambda_.1} parent=5 // pred_check
      %p3365 = pneg %p3364
    $region62: #{_lambda_.1} parent=5 // pred_check_branch
      %3367 = sbr.rel (%p3365) target = $region64
    $region63: #{_lambda_.1} parent=5 // pred_region
      %s3368 = ssub.s32 %s15, 2
      // Predicated region
      $region65: #{_lambda_.1} parent=63 // pred_check
        %p3369 = pneg %p243
      $region66: #{_lambda_.1} parent=63 // pred_check_branch
        %3371 = sbr.rel (%p3369) target = $region68
      $region67: #{_lambda_.1} parent=63 // pred_region
        %p3372 = scmp.lt.s32.totalorder %s21, 1
        %s3373 = scalar_select %p3372, %s21, 1
        %s3374 = smul.addr %s3373, 25
        %s3375 = smul.addr %s3374, 8
        %s3376 = scalar_lea.vmem %s9, %s3375
      $region68: #{_lambda_.1} parent=63 // pred_fallthru
        _
    $region64: #{_lambda_.1} parent=5 // pred_fallthru
      _
  $region6: #{_lambda_.1} parent=0 // loop_footer
    %s19 = sadd.s32 1, %s15
  $region7: #{_lambda_.1} parent=0 // loop_footer_branch
    %14 = sbr.rel target = $region3
  $region8: #{_lambda_.1} parent=0 // loop_exit
    _

</llo_original>
